<compile_context>
chip_gen: v5e
topology: v5e:2x2
jax: 0.10.0
libtpu: 0.0.40
codegen_flags: <defaults>
</compile_context>

<pallas_src>
import functools

import jax
import jax.numpy as jnp
from jax import lax
from jax.experimental import pallas as pl
from jax.experimental.pallas import tpu as pltpu


def _me_decoder_kernel(x_ref, skip_ref, awt_ref, ah_ref, mask_ref,
                       wr_ref, br_ref, w1_ref, s1_ref, b1_ref,
                       w2_ref, s2_ref, b2_ref, out_ref,
                       *, c_in, h_in, h_out, w_out, c_out, num_experts, shifts):
    hw = h_out * w_out

    # ---- bilinear 2x upsample (align_corners=True), separable ----------------
    x2 = x_ref[0]                                              # (C_in*H_in, W_in)
    t = jnp.dot(x2, awt_ref[...],
                preferred_element_type=jnp.float32)            # (C_in*H_in, W_out)
    t3 = t.reshape(c_in, h_in, w_out)
    ah_b = jnp.broadcast_to(ah_ref[...][None, :, :], (c_in, h_out, h_in))
    u3 = jnp.einsum('cgh,chw->cgw', ah_b, t3,
                    preferred_element_type=jnp.float32)        # (C_in, H_out, W_out)
    # merge (H_out, W_out) onto the lane axis via lane-wise concatenation.
    x_up = jnp.concatenate([u3[:, g, :] for g in range(h_out)], axis=1)  # (C_in, HW)
    x_comb = jnp.concatenate([x_up, skip_ref[0]], axis=0)      # (C_tot, HW)

    # ---- routing head: global avg pool -> linear -> softmax ------------------
    route = jnp.dot(wr_ref[...], x_comb,
                    preferred_element_type=jnp.float32)        # (E, HW)
    logits = jnp.sum(route, axis=1, keepdims=True) * (1.0 / hw) + br_ref[...]
    logits = logits - jnp.max(logits, axis=0, keepdims=True)
    ew = jnp.exp(logits)
    rw = ew * pl.reciprocal(jnp.sum(ew, axis=0, keepdims=True), approx=True)  # (E,1)

    masks = mask_ref[...]                                      # (9, HW)

    def patches(src):
        # 9 lane-rolled + boundary-masked copies of src (C, HW); expert-invariant.
        out = []
        for k in range(9):
            p = src if shifts[k] == 0 else pltpu.roll(src, shift=shifts[k], axis=1)
            if k != 4:                                         # center tap: all valid
                p = p * masks[k:k + 1, :]
            out.append(p)
        return out

    # ---- layer 1: im2col once, all experts packed into one matmul ------------
    p1 = jnp.concatenate(patches(x_comb), axis=0)              # (9*C_tot, HW)
    h1 = jnp.dot(w1_ref[...], p1,
                 preferred_element_type=jnp.float32)           # (E*C_out, HW)
    h1 = jnp.maximum(h1 * s1_ref[...] + b1_ref[...], 0.0)      # folded BN + ReLU

    # ---- layer 2: shifts/masks hoisted across experts -------------------------
    rolled = patches(h1)                                       # 9 x (E*C_out, HW)
    acc = jnp.zeros((c_out, hw), jnp.float32)
    for e in range(num_experts):
        p2 = jnp.concatenate(
            [rolled[k][e * c_out:(e + 1) * c_out, :] for k in range(9)], axis=0)
        h2 = jnp.dot(w2_ref[e], p2,
                     preferred_element_type=jnp.float32)       # (C_out, HW)
        rwe = rw[e:e + 1, 0:1]                                 # (1, 1) routing weight
        # routing weight folded into the (positive-scale-commuting) BN + ReLU
        h2 = jnp.maximum(h2 * (s2_ref[e] * rwe) + b2_ref[e] * rwe, 0.0)
        acc = acc + h2
    out_ref[0] = acc


def conv_tap_tables(h, w):
    """Boundary masks (9, H*W) and lane-roll shifts for a 3x3 SAME conv."""
    hw = h * w
    ii = jnp.arange(hw, dtype=jnp.int32) // w
    jj = jnp.arange(hw, dtype=jnp.int32) % w
    masks, shifts = [], []
    for dy in (-1, 0, 1):
        for dx in (-1, 0, 1):
            valid = ((ii + dy >= 0) & (ii + dy < h) &
                     (jj + dx >= 0) & (jj + dx < w))
            masks.append(valid.astype(jnp.float32))
            shifts.append(int((-(dy * w + dx)) % hw))
    return jnp.stack(masks, axis=0), tuple(shifts)


def me_decoder_block(x, skip, params):
    """x: (B, C_in, H, W); skip: (B, C_skip, 2H, 2W) — NCHW like the PyTorch module."""
    B, c_in, h_in, w_in = x.shape
    _, c_skip, h_out, w_out = skip.shape
    c_tot = c_in + c_skip
    E, c_out = params["s1"].shape
    hw_out = h_out * w_out

    # grid-invariant tables, packed for lane-dense (C, H*W) compute
    A_h = params["A_h"]                                   # (H_out, H_in)
    A_wT = params["A_w"].T                                # (W_in, W_out)
    masks, shifts = conv_tap_tables(h_out, w_out)         # (9, HW), 9 static ints
    w1p = params["w1_oihw"].transpose(0, 1, 3, 4, 2).reshape(E * c_out, 9 * c_tot)
    w2p = params["w2_oihw"].transpose(0, 1, 3, 4, 2).reshape(E, c_out, 9 * c_out)
    s1p = params["s1"].reshape(E * c_out, 1)
    b1p = params["b1"].reshape(E * c_out, 1)
    s2p = params["s2"].reshape(E, c_out, 1)
    b2p = params["b2"].reshape(E, c_out, 1)

    x_flat = x.reshape(B, c_in * h_in, w_in)
    skip_flat = skip.reshape(B, c_skip, hw_out)

    kernel = functools.partial(
        _me_decoder_kernel, c_in=c_in, h_in=h_in, h_out=h_out, w_out=w_out,
        c_out=c_out, num_experts=E, shifts=shifts)

    out_flat = pl.pallas_call(
        kernel,
        out_shape=jax.ShapeDtypeStruct((B, c_out, hw_out), jnp.float32),
        grid=(B,),
        in_specs=[
            pl.BlockSpec((1, c_in * h_in, w_in), lambda b: (b, 0, 0)),   # x
            pl.BlockSpec((1, c_skip, hw_out), lambda b: (b, 0, 0)),      # skip
            pl.BlockSpec((w_in, w_out), lambda b: (0, 0)),               # A_w^T
            pl.BlockSpec((h_out, h_in), lambda b: (0, 0)),               # A_h
            pl.BlockSpec((9, hw_out), lambda b: (0, 0)),                 # tap masks
            pl.BlockSpec((E, c_tot), lambda b: (0, 0)),                  # routing W
            pl.BlockSpec((E, 1), lambda b: (0, 0)),                      # routing b
            pl.BlockSpec((E * c_out, 9 * c_tot), lambda b: (0, 0)),      # W1 packed
            pl.BlockSpec((E * c_out, 1), lambda b: (0, 0)),              # s1 packed
            pl.BlockSpec((E * c_out, 1), lambda b: (0, 0)),              # b1 packed
            pl.BlockSpec((E, c_out, 9 * c_out), lambda b: (0, 0, 0)),    # W2
            pl.BlockSpec((E, c_out, 1), lambda b: (0, 0, 0)),            # s2
            pl.BlockSpec((E, c_out, 1), lambda b: (0, 0, 0)),            # b2
        ],
        out_specs=pl.BlockSpec((1, c_out, hw_out), lambda b: (b, 0, 0)),
        compiler_params=pltpu.CompilerParams(
            dimension_semantics=("parallel",)),
    )(x_flat, skip_flat, A_wT, A_h, masks, params["wr"], params["br"],
      w1p, s1p, b1p, w2p, s2p, b2p)
    return out_flat.reshape(B, c_out, h_out, w_out)


def bilinear_matrix(n_out, n_in):
    # nn.UpsamplingBilinear2d => align_corners=True
    i = jnp.arange(n_out, dtype=jnp.float32)
    src = i * (n_in - 1) / (n_out - 1) if n_out > 1 else jnp.zeros_like(i)
    i0 = jnp.clip(jnp.floor(src).astype(jnp.int32), 0, n_in - 1)
    i1 = jnp.clip(i0 + 1, 0, n_in - 1)
    frac = src - i0.astype(jnp.float32)
    A = jnp.zeros((n_out, n_in), jnp.float32)
    A = A.at[jnp.arange(n_out), i0].add(1.0 - frac)
    A = A.at[jnp.arange(n_out), i1].add(frac)
    return A


def init_params(key, c_in, c_skip, c_out, num_experts, h_in, w_in):
    c_tot = c_in + c_skip
    ks = jax.random.split(key, 12)
    eps = 1e-5
    # per-expert conv weights, OIHW (PyTorch) layout
    w1_oihw = 0.1 * jax.random.normal(ks[0], (num_experts, c_out, c_tot, 3, 3),
                                      jnp.float32)
    w2_oihw = 0.1 * jax.random.normal(ks[1], (num_experts, c_out, c_out, 3, 3),
                                      jnp.float32)

    def bn_fold(kg, kb, km, kv):
        gamma = 1.0 + 0.1 * jax.random.normal(kg, (num_experts, c_out), jnp.float32)
        beta = 0.05 * jax.random.normal(kb, (num_experts, c_out), jnp.float32)
        rmean = 0.1 * jax.random.normal(km, (num_experts, c_out), jnp.float32)
        rvar = 0.5 + jax.random.uniform(kv, (num_experts, c_out), jnp.float32)
        scale = gamma / jnp.sqrt(rvar + eps)
        bias = beta - rmean * scale
        return scale, bias

    s1, b1 = bn_fold(ks[2], ks[3], ks[4], ks[5])
    s2, b2 = bn_fold(ks[6], ks[7], ks[8], ks[9])
    wr = 0.1 * jax.random.normal(ks[10], (num_experts, c_tot), jnp.float32)
    br = 0.1 * jax.random.normal(ks[11], (num_experts, 1), jnp.float32)
    return dict(
        w1_oihw=w1_oihw, w2_oihw=w2_oihw,
        s1=s1, b1=b1, s2=s2, b2=b2, wr=wr, br=br,
        A_h=bilinear_matrix(2 * h_in, h_in),
        A_w=bilinear_matrix(2 * w_in, w_in),
    )


def reference_forward(x, skip, p):
    # Pure-JAX reference of the same forward pass (NCHW).
    E, c_out = p["s1"].shape
    x_up = jnp.einsum('hH,wW,bcHW->bchw', p["A_h"], p["A_w"], x)
    x_comb = jnp.concatenate([x_up, skip], axis=1)
    pooled = jnp.mean(x_comb, axis=(2, 3))                    # (B, C_tot)
    logits = pooled @ p["wr"].T + p["br"][:, 0]
    rw = jax.nn.softmax(logits, axis=-1)
    outs = []
    for e in range(E):
        h = lax.conv_general_dilated(x_comb, p["w1_oihw"][e], (1, 1), 'SAME',
                                     dimension_numbers=('NCHW', 'OIHW', 'NCHW'))
        h = jnp.maximum(h * p["s1"][e][None, :, None, None]
                        + p["b1"][e][None, :, None, None], 0.0)
        h = lax.conv_general_dilated(h, p["w2_oihw"][e], (1, 1), 'SAME',
                                     dimension_numbers=('NCHW', 'OIHW', 'NCHW'))
        h = jnp.maximum(h * p["s2"][e][None, :, None, None]
                        + p["b2"][e][None, :, None, None], 0.0)
        outs.append(h)
    stack = jnp.stack(outs, axis=1)                           # (B, E, C, H, W)
    return jnp.sum(stack * rw[:, :, None, None, None], axis=1)


if __name__ == "__main__":
    B, c_in, c_skip, c_out, num_experts = 2, 4, 4, 8, 4
    h_in = w_in = 8

    key = jax.random.PRNGKey(0)
    kx, ks, kp = jax.random.split(key, 3)
    x = jax.random.normal(kx, (B, c_in, h_in, w_in), jnp.float32)
    skip = jax.random.normal(ks, (B, c_skip, 2 * h_in, 2 * w_in), jnp.float32)
    params = init_params(kp, c_in, c_skip, c_out, num_experts, h_in, w_in)

    out = jax.block_until_ready(me_decoder_block(x, skip, params))
    ref = jax.block_until_ready(reference_forward(x, skip, params))

    assert out.shape == (B, c_out, 2 * h_in, 2 * w_in), out.shape
    err = float(jnp.max(jnp.abs(out - ref)))
    assert err < 2e-2, f"max abs err {err}"
    print("KERNEL_OK")
</pallas_src>

<mosaic_0001>
module attributes {stable_mosaic.version = 11 : i64} {
  func.func @_me_decoder_kernel(%arg0: i32, %arg1: memref<1x32x8xf32, #tpu.memory_space<vmem>>, %arg2: memref<1x4x256xf32, #tpu.memory_space<vmem>>, %arg3: memref<8x16xf32, #tpu.memory_space<vmem>>, %arg4: memref<16x8xf32, #tpu.memory_space<vmem>>, %arg5: memref<9x256xf32, #tpu.memory_space<vmem>>, %arg6: memref<4x8xf32, #tpu.memory_space<vmem>>, %arg7: memref<4x1xf32, #tpu.memory_space<vmem>>, %arg8: memref<32x72xf32, #tpu.memory_space<vmem>>, %arg9: memref<32x1xf32, #tpu.memory_space<vmem>>, %arg10: memref<32x1xf32, #tpu.memory_space<vmem>>, %arg11: memref<4x8x72xf32, #tpu.memory_space<vmem>>, %arg12: memref<4x8x1xf32, #tpu.memory_space<vmem>>, %arg13: memref<4x8x1xf32, #tpu.memory_space<vmem>>, %arg14: memref<1x8x256xf32, #tpu.memory_space<vmem>>) attributes {dimension_semantics = [#tpu.dimension_semantics<parallel>], iteration_bounds = array<i64: 2>, scalar_prefetch = 0 : i64, scratch_operands = 0 : i64, tpu.core_type = #tpu.core_type<tc>, window_params = [{transform_indices = @transform_0, window_bounds = array<i64: 1, 32, 8>}, {transform_indices = @transform_1, window_bounds = array<i64: 1, 4, 256>}, {pipeline_mode = #tpu.pipeline_mode<synchronous>, transform_indices = @transform_2, window_bounds = array<i64: 8, 16>}, {pipeline_mode = #tpu.pipeline_mode<synchronous>, transform_indices = @transform_3, window_bounds = array<i64: 16, 8>}, {pipeline_mode = #tpu.pipeline_mode<synchronous>, transform_indices = @transform_4, window_bounds = array<i64: 9, 256>}, {pipeline_mode = #tpu.pipeline_mode<synchronous>, transform_indices = @transform_5, window_bounds = array<i64: 4, 8>}, {pipeline_mode = #tpu.pipeline_mode<synchronous>, transform_indices = @transform_6, window_bounds = array<i64: 4, 1>}, {pipeline_mode = #tpu.pipeline_mode<synchronous>, transform_indices = @transform_7, window_bounds = array<i64: 32, 72>}, {pipeline_mode = #tpu.pipeline_mode<synchronous>, transform_indices = @transform_8, window_bounds = array<i64: 32, 1>}, {pipeline_mode = #tpu.pipeline_mode<synchronous>, transform_indices = @transform_9, window_bounds = array<i64: 32, 1>}, {pipeline_mode = #tpu.pipeline_mode<synchronous>, transform_indices = @transform_10, window_bounds = array<i64: 4, 8, 72>}, {pipeline_mode = #tpu.pipeline_mode<synchronous>, transform_indices = @transform_11, window_bounds = array<i64: 4, 8, 1>}, {pipeline_mode = #tpu.pipeline_mode<synchronous>, transform_indices = @transform_12, window_bounds = array<i64: 4, 8, 1>}, {transform_indices = @transform_13, window_bounds = array<i64: 1, 8, 256>}]} {
    %c0 = arith.constant 0 : index
    %c0_0 = arith.constant 0 : index
    %c0_1 = arith.constant 0 : index
    %0 = vector.load %arg1[%c0, %c0_0, %c0_1] : memref<1x32x8xf32, #tpu.memory_space<vmem>>, vector<1x32x8xf32>
    %1 = vector.shape_cast %0 : vector<1x32x8xf32> to vector<32x8xf32>
    %c0_2 = arith.constant 0 : index
    %c0_3 = arith.constant 0 : index
    %2 = vector.load %arg3[%c0_2, %c0_3] : memref<8x16xf32, #tpu.memory_space<vmem>>, vector<8x16xf32>
    %cst = arith.constant dense<0.000000e+00> : vector<32x16xf32>
    %3 = tpu.matmul %1, %2, %cst {dimension_numbers = #tpu.dot_dimension_numbers<[1], [0], [0], [1], [0, 0, 1, 1], [], []>} : vector<32x8xf32>, vector<8x16xf32>, vector<32x16xf32> -> vector<32x16xf32>
    %4 = vector.shape_cast %3 : vector<32x16xf32> to vector<4x8x16xf32>
    %c0_4 = arith.constant 0 : index
    %c0_5 = arith.constant 0 : index
    %5 = vector.load %arg4[%c0_4, %c0_5] : memref<16x8xf32, #tpu.memory_space<vmem>>, vector<16x8xf32>
    %6 = vector.shape_cast %5 : vector<16x8xf32> to vector<1x16x8xf32>
    %7 = vector.shape_cast %6 : vector<1x16x8xf32> to vector<1x16x8xf32>
    %8 = vector.broadcast %7 : vector<1x16x8xf32> to vector<4x16x8xf32>
    "tpu.trace_start"() <{level = 10 : i32, message = "cgh,chw->cgw"}> : () -> ()
    %cst_6 = arith.constant dense<0.000000e+00> : vector<4x16x16xf32>
    %9 = tpu.matmul %8, %4, %cst_6 {dimension_numbers = #tpu.dot_dimension_numbers<[2], [1], [1], [2], [0, 0, 0, 1, 1, 2], [0], [0]>} : vector<4x16x8xf32>, vector<4x8x16xf32>, vector<4x16x16xf32> -> vector<4x16x16xf32>
    "tpu.trace_stop"() : () -> ()
    %10 = vector.extract_strided_slice %9 {offsets = [0, 0, 0], sizes = [4, 1, 16], strides = [1, 1, 1]} : vector<4x16x16xf32> to vector<4x1x16xf32>
    %11 = vector.shape_cast %10 : vector<4x1x16xf32> to vector<4x16xf32>
    %12 = vector.extract_strided_slice %9 {offsets = [0, 1, 0], sizes = [4, 1, 16], strides = [1, 1, 1]} : vector<4x16x16xf32> to vector<4x1x16xf32>
    %13 = vector.shape_cast %12 : vector<4x1x16xf32> to vector<4x16xf32>
    %14 = vector.extract_strided_slice %9 {offsets = [0, 2, 0], sizes = [4, 1, 16], strides = [1, 1, 1]} : vector<4x16x16xf32> to vector<4x1x16xf32>
    %15 = vector.shape_cast %14 : vector<4x1x16xf32> to vector<4x16xf32>
    %16 = vector.extract_strided_slice %9 {offsets = [0, 3, 0], sizes = [4, 1, 16], strides = [1, 1, 1]} : vector<4x16x16xf32> to vector<4x1x16xf32>
    %17 = vector.shape_cast %16 : vector<4x1x16xf32> to vector<4x16xf32>
    %18 = vector.extract_strided_slice %9 {offsets = [0, 4, 0], sizes = [4, 1, 16], strides = [1, 1, 1]} : vector<4x16x16xf32> to vector<4x1x16xf32>
    %19 = vector.shape_cast %18 : vector<4x1x16xf32> to vector<4x16xf32>
    %20 = vector.extract_strided_slice %9 {offsets = [0, 5, 0], sizes = [4, 1, 16], strides = [1, 1, 1]} : vector<4x16x16xf32> to vector<4x1x16xf32>
    %21 = vector.shape_cast %20 : vector<4x1x16xf32> to vector<4x16xf32>
    %22 = vector.extract_strided_slice %9 {offsets = [0, 6, 0], sizes = [4, 1, 16], strides = [1, 1, 1]} : vector<4x16x16xf32> to vector<4x1x16xf32>
    %23 = vector.shape_cast %22 : vector<4x1x16xf32> to vector<4x16xf32>
    %24 = vector.extract_strided_slice %9 {offsets = [0, 7, 0], sizes = [4, 1, 16], strides = [1, 1, 1]} : vector<4x16x16xf32> to vector<4x1x16xf32>
    %25 = vector.shape_cast %24 : vector<4x1x16xf32> to vector<4x16xf32>
    %26 = vector.extract_strided_slice %9 {offsets = [0, 8, 0], sizes = [4, 1, 16], strides = [1, 1, 1]} : vector<4x16x16xf32> to vector<4x1x16xf32>
    %27 = vector.shape_cast %26 : vector<4x1x16xf32> to vector<4x16xf32>
    %28 = vector.extract_strided_slice %9 {offsets = [0, 9, 0], sizes = [4, 1, 16], strides = [1, 1, 1]} : vector<4x16x16xf32> to vector<4x1x16xf32>
    %29 = vector.shape_cast %28 : vector<4x1x16xf32> to vector<4x16xf32>
    %30 = vector.extract_strided_slice %9 {offsets = [0, 10, 0], sizes = [4, 1, 16], strides = [1, 1, 1]} : vector<4x16x16xf32> to vector<4x1x16xf32>
    %31 = vector.shape_cast %30 : vector<4x1x16xf32> to vector<4x16xf32>
    %32 = vector.extract_strided_slice %9 {offsets = [0, 11, 0], sizes = [4, 1, 16], strides = [1, 1, 1]} : vector<4x16x16xf32> to vector<4x1x16xf32>
    %33 = vector.shape_cast %32 : vector<4x1x16xf32> to vector<4x16xf32>
    %34 = vector.extract_strided_slice %9 {offsets = [0, 12, 0], sizes = [4, 1, 16], strides = [1, 1, 1]} : vector<4x16x16xf32> to vector<4x1x16xf32>
    %35 = vector.shape_cast %34 : vector<4x1x16xf32> to vector<4x16xf32>
    %36 = vector.extract_strided_slice %9 {offsets = [0, 13, 0], sizes = [4, 1, 16], strides = [1, 1, 1]} : vector<4x16x16xf32> to vector<4x1x16xf32>
    %37 = vector.shape_cast %36 : vector<4x1x16xf32> to vector<4x16xf32>
    %38 = vector.extract_strided_slice %9 {offsets = [0, 14, 0], sizes = [4, 1, 16], strides = [1, 1, 1]} : vector<4x16x16xf32> to vector<4x1x16xf32>
    %39 = vector.shape_cast %38 : vector<4x1x16xf32> to vector<4x16xf32>
    %40 = vector.extract_strided_slice %9 {offsets = [0, 15, 0], sizes = [4, 1, 16], strides = [1, 1, 1]} : vector<4x16x16xf32> to vector<4x1x16xf32>
    %41 = vector.shape_cast %40 : vector<4x1x16xf32> to vector<4x16xf32>
    %42 = tpu.concatenate %11, %13, %15, %17, %19, %21, %23, %25, %27, %29, %31, %33, %35, %37, %39, %41 in 1 : vector<4x16xf32>, vector<4x16xf32>, vector<4x16xf32>, vector<4x16xf32>, vector<4x16xf32>, vector<4x16xf32>, vector<4x16xf32>, vector<4x16xf32>, vector<4x16xf32>, vector<4x16xf32>, vector<4x16xf32>, vector<4x16xf32>, vector<4x16xf32>, vector<4x16xf32>, vector<4x16xf32>, vector<4x16xf32> -> vector<4x256xf32>
    %c0_7 = arith.constant 0 : index
    %c0_8 = arith.constant 0 : index
    %c0_9 = arith.constant 0 : index
    %43 = vector.load %arg2[%c0_7, %c0_8, %c0_9] : memref<1x4x256xf32, #tpu.memory_space<vmem>>, vector<1x4x256xf32>
    %44 = vector.shape_cast %43 : vector<1x4x256xf32> to vector<4x256xf32>
    %45 = tpu.concatenate %42, %44 in 0 : vector<4x256xf32>, vector<4x256xf32> -> vector<8x256xf32>
    %c0_10 = arith.constant 0 : index
    %c0_11 = arith.constant 0 : index
    %46 = vector.load %arg6[%c0_10, %c0_11] : memref<4x8xf32, #tpu.memory_space<vmem>>, vector<4x8xf32>
    %cst_12 = arith.constant dense<0.000000e+00> : vector<4x256xf32>
    %47 = tpu.matmul %46, %45, %cst_12 {dimension_numbers = #tpu.dot_dimension_numbers<[1], [0], [0], [1], [0, 0, 1, 1], [], []>} : vector<4x8xf32>, vector<8x256xf32>, vector<4x256xf32> -> vector<4x256xf32>
    %cst_13 = arith.constant dense<0.000000e+00> : vector<4xf32>
    %48 = vector.multi_reduction <add>, %47, %cst_13 [1] : vector<4x256xf32> to vector<4xf32>
    %49 = vector.shape_cast %48 : vector<4xf32> to vector<4x1xf32>
    %cst_14 = arith.constant 3.906250e-03 : f32
    %50 = vector.broadcast %cst_14 : f32 to vector<4x1xf32>
    %51 = arith.mulf %49, %50 : vector<4x1xf32>
    %c0_15 = arith.constant 0 : index
    %c0_16 = arith.constant 0 : index
    %52 = vector.load %arg7[%c0_15, %c0_16] : memref<4x1xf32, #tpu.memory_space<vmem>>, vector<4x1xf32>
    %53 = arith.addf %51, %52 : vector<4x1xf32>
    %cst_17 = arith.constant dense<0xFF800000> : vector<1xf32>
    %54 = vector.multi_reduction <maximumf>, %53, %cst_17 [0] : vector<4x1xf32> to vector<1xf32>
    %55 = vector.shape_cast %54 : vector<1xf32> to vector<1x1xf32>
    %56 = vector.broadcast %55 : vector<1x1xf32> to vector<4x1xf32>
    %57 = arith.subf %53, %56 : vector<4x1xf32>
    %58 = math.exp %57 : vector<4x1xf32>
    %cst_18 = arith.constant dense<0.000000e+00> : vector<1xf32>
    %59 = vector.multi_reduction <add>, %58, %cst_18 [0] : vector<4x1xf32> to vector<1xf32>
    %60 = vector.shape_cast %59 : vector<1xf32> to vector<1x1xf32>
    %61 = tpu.reciprocal %60 {approx = true} : vector<1x1xf32> -> vector<1x1xf32>
    %62 = vector.broadcast %61 : vector<1x1xf32> to vector<4x1xf32>
    %63 = arith.mulf %58, %62 : vector<4x1xf32>
    %c0_19 = arith.constant 0 : index
    %c0_20 = arith.constant 0 : index
    %64 = vector.load %arg5[%c0_19, %c0_20] : memref<9x256xf32, #tpu.memory_space<vmem>>, vector<9x256xf32>
    %c17_i32 = arith.constant 17 : i32
    %65 = tpu.dynamic_rotate %45 by %c17_i32 dim 1 : vector<8x256xf32>, i32 -> vector<8x256xf32>
    %66 = vector.extract_strided_slice %64 {offsets = [0, 0], sizes = [1, 256], strides = [1, 1]} : vector<9x256xf32> to vector<1x256xf32>
    %67 = vector.broadcast %66 : vector<1x256xf32> to vector<8x256xf32>
    %68 = arith.mulf %65, %67 : vector<8x256xf32>
    %c16_i32 = arith.constant 16 : i32
    %69 = tpu.dynamic_rotate %45 by %c16_i32 dim 1 : vector<8x256xf32>, i32 -> vector<8x256xf32>
    %70 = vector.extract_strided_slice %64 {offsets = [1, 0], sizes = [1, 256], strides = [1, 1]} : vector<9x256xf32> to vector<1x256xf32>
    %71 = vector.broadcast %70 : vector<1x256xf32> to vector<8x256xf32>
    %72 = arith.mulf %69, %71 : vector<8x256xf32>
    %c15_i32 = arith.constant 15 : i32
    %73 = tpu.dynamic_rotate %45 by %c15_i32 dim 1 : vector<8x256xf32>, i32 -> vector<8x256xf32>
    %74 = vector.extract_strided_slice %64 {offsets = [2, 0], sizes = [1, 256], strides = [1, 1]} : vector<9x256xf32> to vector<1x256xf32>
    %75 = vector.broadcast %74 : vector<1x256xf32> to vector<8x256xf32>
    %76 = arith.mulf %73, %75 : vector<8x256xf32>
    %c1_i32 = arith.constant 1 : i32
    %77 = tpu.dynamic_rotate %45 by %c1_i32 dim 1 : vector<8x256xf32>, i32 -> vector<8x256xf32>
    %78 = vector.extract_strided_slice %64 {offsets = [3, 0], sizes = [1, 256], strides = [1, 1]} : vector<9x256xf32> to vector<1x256xf32>
    %79 = vector.broadcast %78 : vector<1x256xf32> to vector<8x256xf32>
    %80 = arith.mulf %77, %79 : vector<8x256xf32>
    %c255_i32 = arith.constant 255 : i32
    %81 = tpu.dynamic_rotate %45 by %c255_i32 dim 1 : vector<8x256xf32>, i32 -> vector<8x256xf32>
    %82 = vector.extract_strided_slice %64 {offsets = [5, 0], sizes = [1, 256], strides = [1, 1]} : vector<9x256xf32> to vector<1x256xf32>
    %83 = vector.broadcast %82 : vector<1x256xf32> to vector<8x256xf32>
    %84 = arith.mulf %81, %83 : vector<8x256xf32>
    %c241_i32 = arith.constant 241 : i32
    %85 = tpu.dynamic_rotate %45 by %c241_i32 dim 1 : vector<8x256xf32>, i32 -> vector<8x256xf32>
    %86 = vector.extract_strided_slice %64 {offsets = [6, 0], sizes = [1, 256], strides = [1, 1]} : vector<9x256xf32> to vector<1x256xf32>
    %87 = vector.broadcast %86 : vector<1x256xf32> to vector<8x256xf32>
    %88 = arith.mulf %85, %87 : vector<8x256xf32>
    %c240_i32 = arith.constant 240 : i32
    %89 = tpu.dynamic_rotate %45 by %c240_i32 dim 1 : vector<8x256xf32>, i32 -> vector<8x256xf32>
    %90 = vector.extract_strided_slice %64 {offsets = [7, 0], sizes = [1, 256], strides = [1, 1]} : vector<9x256xf32> to vector<1x256xf32>
    %91 = vector.broadcast %90 : vector<1x256xf32> to vector<8x256xf32>
    %92 = arith.mulf %89, %91 : vector<8x256xf32>
    %c239_i32 = arith.constant 239 : i32
    %93 = tpu.dynamic_rotate %45 by %c239_i32 dim 1 : vector<8x256xf32>, i32 -> vector<8x256xf32>
    %94 = vector.extract_strided_slice %64 {offsets = [8, 0], sizes = [1, 256], strides = [1, 1]} : vector<9x256xf32> to vector<1x256xf32>
    %95 = vector.broadcast %94 : vector<1x256xf32> to vector<8x256xf32>
    %96 = arith.mulf %93, %95 : vector<8x256xf32>
    %97 = tpu.concatenate %68, %72, %76, %80, %45, %84, %88, %92, %96 in 0 : vector<8x256xf32>, vector<8x256xf32>, vector<8x256xf32>, vector<8x256xf32>, vector<8x256xf32>, vector<8x256xf32>, vector<8x256xf32>, vector<8x256xf32>, vector<8x256xf32> -> vector<72x256xf32>
    %c0_21 = arith.constant 0 : index
    %c0_22 = arith.constant 0 : index
    %98 = vector.load %arg8[%c0_21, %c0_22] : memref<32x72xf32, #tpu.memory_space<vmem>>, vector<32x72xf32>
    %cst_23 = arith.constant dense<0.000000e+00> : vector<32x256xf32>
    %99 = tpu.matmul %98, %97, %cst_23 {dimension_numbers = #tpu.dot_dimension_numbers<[1], [0], [0], [1], [0, 0, 1, 1], [], []>} : vector<32x72xf32>, vector<72x256xf32>, vector<32x256xf32> -> vector<32x256xf32>
    %c0_24 = arith.constant 0 : index
    %c0_25 = arith.constant 0 : index
    %100 = vector.load %arg9[%c0_24, %c0_25] : memref<32x1xf32, #tpu.memory_space<vmem>>, vector<32x1xf32>
    %101 = vector.broadcast %100 : vector<32x1xf32> to vector<32x256xf32>
    %102 = arith.mulf %99, %101 : vector<32x256xf32>
    %c0_26 = arith.constant 0 : index
    %c0_27 = arith.constant 0 : index
    %103 = vector.load %arg10[%c0_26, %c0_27] : memref<32x1xf32, #tpu.memory_space<vmem>>, vector<32x1xf32>
    %104 = vector.broadcast %103 : vector<32x1xf32> to vector<32x256xf32>
    %105 = arith.addf %102, %104 : vector<32x256xf32>
    %cst_28 = arith.constant 0.000000e+00 : f32
    %106 = vector.broadcast %cst_28 : f32 to vector<32x256xf32>
    %107 = arith.maximumf %105, %106 : vector<32x256xf32>
    %c17_i32_29 = arith.constant 17 : i32
    %108 = tpu.dynamic_rotate %107 by %c17_i32_29 dim 1 : vector<32x256xf32>, i32 -> vector<32x256xf32>
    %109 = vector.extract_strided_slice %64 {offsets = [0, 0], sizes = [1, 256], strides = [1, 1]} : vector<9x256xf32> to vector<1x256xf32>
    %110 = vector.broadcast %109 : vector<1x256xf32> to vector<32x256xf32>
    %111 = arith.mulf %108, %110 : vector<32x256xf32>
    %c16_i32_30 = arith.constant 16 : i32
    %112 = tpu.dynamic_rotate %107 by %c16_i32_30 dim 1 : vector<32x256xf32>, i32 -> vector<32x256xf32>
    %113 = vector.extract_strided_slice %64 {offsets = [1, 0], sizes = [1, 256], strides = [1, 1]} : vector<9x256xf32> to vector<1x256xf32>
    %114 = vector.broadcast %113 : vector<1x256xf32> to vector<32x256xf32>
    %115 = arith.mulf %112, %114 : vector<32x256xf32>
    %c15_i32_31 = arith.constant 15 : i32
    %116 = tpu.dynamic_rotate %107 by %c15_i32_31 dim 1 : vector<32x256xf32>, i32 -> vector<32x256xf32>
    %117 = vector.extract_strided_slice %64 {offsets = [2, 0], sizes = [1, 256], strides = [1, 1]} : vector<9x256xf32> to vector<1x256xf32>
    %118 = vector.broadcast %117 : vector<1x256xf32> to vector<32x256xf32>
    %119 = arith.mulf %116, %118 : vector<32x256xf32>
    %c1_i32_32 = arith.constant 1 : i32
    %120 = tpu.dynamic_rotate %107 by %c1_i32_32 dim 1 : vector<32x256xf32>, i32 -> vector<32x256xf32>
    %121 = vector.extract_strided_slice %64 {offsets = [3, 0], sizes = [1, 256], strides = [1, 1]} : vector<9x256xf32> to vector<1x256xf32>
    %122 = vector.broadcast %121 : vector<1x256xf32> to vector<32x256xf32>
    %123 = arith.mulf %120, %122 : vector<32x256xf32>
    %c255_i32_33 = arith.constant 255 : i32
    %124 = tpu.dynamic_rotate %107 by %c255_i32_33 dim 1 : vector<32x256xf32>, i32 -> vector<32x256xf32>
    %125 = vector.extract_strided_slice %64 {offsets = [5, 0], sizes = [1, 256], strides = [1, 1]} : vector<9x256xf32> to vector<1x256xf32>
    %126 = vector.broadcast %125 : vector<1x256xf32> to vector<32x256xf32>
    %127 = arith.mulf %124, %126 : vector<32x256xf32>
    %c241_i32_34 = arith.constant 241 : i32
    %128 = tpu.dynamic_rotate %107 by %c241_i32_34 dim 1 : vector<32x256xf32>, i32 -> vector<32x256xf32>
    %129 = vector.extract_strided_slice %64 {offsets = [6, 0], sizes = [1, 256], strides = [1, 1]} : vector<9x256xf32> to vector<1x256xf32>
    %130 = vector.broadcast %129 : vector<1x256xf32> to vector<32x256xf32>
    %131 = arith.mulf %128, %130 : vector<32x256xf32>
    %c240_i32_35 = arith.constant 240 : i32
    %132 = tpu.dynamic_rotate %107 by %c240_i32_35 dim 1 : vector<32x256xf32>, i32 -> vector<32x256xf32>
    %133 = vector.extract_strided_slice %64 {offsets = [7, 0], sizes = [1, 256], strides = [1, 1]} : vector<9x256xf32> to vector<1x256xf32>
    %134 = vector.broadcast %133 : vector<1x256xf32> to vector<32x256xf32>
    %135 = arith.mulf %132, %134 : vector<32x256xf32>
    %c239_i32_36 = arith.constant 239 : i32
    %136 = tpu.dynamic_rotate %107 by %c239_i32_36 dim 1 : vector<32x256xf32>, i32 -> vector<32x256xf32>
    %137 = vector.extract_strided_slice %64 {offsets = [8, 0], sizes = [1, 256], strides = [1, 1]} : vector<9x256xf32> to vector<1x256xf32>
    %138 = vector.broadcast %137 : vector<1x256xf32> to vector<32x256xf32>
    %139 = arith.mulf %136, %138 : vector<32x256xf32>
    %cst_37 = arith.constant 0.000000e+00 : f32
    %140 = vector.broadcast %cst_37 : f32 to vector<8x256xf32>
    %141 = vector.extract_strided_slice %111 {offsets = [0, 0], sizes = [8, 256], strides = [1, 1]} : vector<32x256xf32> to vector<8x256xf32>
    %142 = vector.extract_strided_slice %115 {offsets = [0, 0], sizes = [8, 256], strides = [1, 1]} : vector<32x256xf32> to vector<8x256xf32>
    %143 = vector.extract_strided_slice %119 {offsets = [0, 0], sizes = [8, 256], strides = [1, 1]} : vector<32x256xf32> to vector<8x256xf32>
    %144 = vector.extract_strided_slice %123 {offsets = [0, 0], sizes = [8, 256], strides = [1, 1]} : vector<32x256xf32> to vector<8x256xf32>
    %145 = vector.extract_strided_slice %107 {offsets = [0, 0], sizes = [8, 256], strides = [1, 1]} : vector<32x256xf32> to vector<8x256xf32>
    %146 = vector.extract_strided_slice %127 {offsets = [0, 0], sizes = [8, 256], strides = [1, 1]} : vector<32x256xf32> to vector<8x256xf32>
    %147 = vector.extract_strided_slice %131 {offsets = [0, 0], sizes = [8, 256], strides = [1, 1]} : vector<32x256xf32> to vector<8x256xf32>
    %148 = vector.extract_strided_slice %135 {offsets = [0, 0], sizes = [8, 256], strides = [1, 1]} : vector<32x256xf32> to vector<8x256xf32>
    %149 = vector.extract_strided_slice %139 {offsets = [0, 0], sizes = [8, 256], strides = [1, 1]} : vector<32x256xf32> to vector<8x256xf32>
    %150 = tpu.concatenate %141, %142, %143, %144, %145, %146, %147, %148, %149 in 0 : vector<8x256xf32>, vector<8x256xf32>, vector<8x256xf32>, vector<8x256xf32>, vector<8x256xf32>, vector<8x256xf32>, vector<8x256xf32>, vector<8x256xf32>, vector<8x256xf32> -> vector<72x256xf32>
    %c0_38 = arith.constant 0 : index
    %c0_39 = arith.constant 0 : index
    %c0_40 = arith.constant 0 : index
    %151 = vector.load %arg11[%c0_38, %c0_39, %c0_40] : memref<4x8x72xf32, #tpu.memory_space<vmem>>, vector<1x8x72xf32>
    %152 = vector.shape_cast %151 : vector<1x8x72xf32> to vector<8x72xf32>
    %cst_41 = arith.constant dense<0.000000e+00> : vector<8x256xf32>
    %153 = tpu.matmul %152, %150, %cst_41 {dimension_numbers = #tpu.dot_dimension_numbers<[1], [0], [0], [1], [0, 0, 1, 1], [], []>} : vector<8x72xf32>, vector<72x256xf32>, vector<8x256xf32> -> vector<8x256xf32>
    %154 = vector.extract_strided_slice %63 {offsets = [0, 0], sizes = [1, 1], strides = [1, 1]} : vector<4x1xf32> to vector<1x1xf32>
    %c0_42 = arith.constant 0 : index
    %c0_43 = arith.constant 0 : index
    %c0_44 = arith.constant 0 : index
    %155 = vector.load %arg12[%c0_42, %c0_43, %c0_44] : memref<4x8x1xf32, #tpu.memory_space<vmem>>, vector<1x8x1xf32>
    %156 = vector.shape_cast %155 : vector<1x8x1xf32> to vector<8x1xf32>
    %157 = vector.broadcast %154 : vector<1x1xf32> to vector<8x1xf32>
    %158 = arith.mulf %156, %157 : vector<8x1xf32>
    %159 = vector.broadcast %158 : vector<8x1xf32> to vector<8x256xf32>
    %160 = arith.mulf %153, %159 : vector<8x256xf32>
    %c0_45 = arith.constant 0 : index
    %c0_46 = arith.constant 0 : index
    %c0_47 = arith.constant 0 : index
    %161 = vector.load %arg13[%c0_45, %c0_46, %c0_47] : memref<4x8x1xf32, #tpu.memory_space<vmem>>, vector<1x8x1xf32>
    %162 = vector.shape_cast %161 : vector<1x8x1xf32> to vector<8x1xf32>
    %163 = vector.broadcast %154 : vector<1x1xf32> to vector<8x1xf32>
    %164 = arith.mulf %162, %163 : vector<8x1xf32>
    %165 = vector.broadcast %164 : vector<8x1xf32> to vector<8x256xf32>
    %166 = arith.addf %160, %165 : vector<8x256xf32>
    %cst_48 = arith.constant 0.000000e+00 : f32
    %167 = vector.broadcast %cst_48 : f32 to vector<8x256xf32>
    %168 = arith.maximumf %166, %167 : vector<8x256xf32>
    %169 = arith.addf %140, %168 : vector<8x256xf32>
    %170 = vector.extract_strided_slice %111 {offsets = [8, 0], sizes = [8, 256], strides = [1, 1]} : vector<32x256xf32> to vector<8x256xf32>
    %171 = vector.extract_strided_slice %115 {offsets = [8, 0], sizes = [8, 256], strides = [1, 1]} : vector<32x256xf32> to vector<8x256xf32>
    %172 = vector.extract_strided_slice %119 {offsets = [8, 0], sizes = [8, 256], strides = [1, 1]} : vector<32x256xf32> to vector<8x256xf32>
    %173 = vector.extract_strided_slice %123 {offsets = [8, 0], sizes = [8, 256], strides = [1, 1]} : vector<32x256xf32> to vector<8x256xf32>
    %174 = vector.extract_strided_slice %107 {offsets = [8, 0], sizes = [8, 256], strides = [1, 1]} : vector<32x256xf32> to vector<8x256xf32>
    %175 = vector.extract_strided_slice %127 {offsets = [8, 0], sizes = [8, 256], strides = [1, 1]} : vector<32x256xf32> to vector<8x256xf32>
    %176 = vector.extract_strided_slice %131 {offsets = [8, 0], sizes = [8, 256], strides = [1, 1]} : vector<32x256xf32> to vector<8x256xf32>
    %177 = vector.extract_strided_slice %135 {offsets = [8, 0], sizes = [8, 256], strides = [1, 1]} : vector<32x256xf32> to vector<8x256xf32>
    %178 = vector.extract_strided_slice %139 {offsets = [8, 0], sizes = [8, 256], strides = [1, 1]} : vector<32x256xf32> to vector<8x256xf32>
    %179 = tpu.concatenate %170, %171, %172, %173, %174, %175, %176, %177, %178 in 0 : vector<8x256xf32>, vector<8x256xf32>, vector<8x256xf32>, vector<8x256xf32>, vector<8x256xf32>, vector<8x256xf32>, vector<8x256xf32>, vector<8x256xf32>, vector<8x256xf32> -> vector<72x256xf32>
    %c1 = arith.constant 1 : index
    %c0_49 = arith.constant 0 : index
    %c0_50 = arith.constant 0 : index
    %180 = vector.load %arg11[%c1, %c0_49, %c0_50] : memref<4x8x72xf32, #tpu.memory_space<vmem>>, vector<1x8x72xf32>
    %181 = vector.shape_cast %180 : vector<1x8x72xf32> to vector<8x72xf32>
    %cst_51 = arith.constant dense<0.000000e+00> : vector<8x256xf32>
    %182 = tpu.matmul %181, %179, %cst_51 {dimension_numbers = #tpu.dot_dimension_numbers<[1], [0], [0], [1], [0, 0, 1, 1], [], []>} : vector<8x72xf32>, vector<72x256xf32>, vector<8x256xf32> -> vector<8x256xf32>
    %183 = vector.extract_strided_slice %63 {offsets = [1, 0], sizes = [1, 1], strides = [1, 1]} : vector<4x1xf32> to vector<1x1xf32>
    %c1_52 = arith.constant 1 : index
    %c0_53 = arith.constant 0 : index
    %c0_54 = arith.constant 0 : index
    %184 = vector.load %arg12[%c1_52, %c0_53, %c0_54] : memref<4x8x1xf32, #tpu.memory_space<vmem>>, vector<1x8x1xf32>
    %185 = vector.shape_cast %184 : vector<1x8x1xf32> to vector<8x1xf32>
    %186 = vector.broadcast %183 : vector<1x1xf32> to vector<8x1xf32>
    %187 = arith.mulf %185, %186 : vector<8x1xf32>
    %188 = vector.broadcast %187 : vector<8x1xf32> to vector<8x256xf32>
    %189 = arith.mulf %182, %188 : vector<8x256xf32>
    %c1_55 = arith.constant 1 : index
    %c0_56 = arith.constant 0 : index
    %c0_57 = arith.constant 0 : index
    %190 = vector.load %arg13[%c1_55, %c0_56, %c0_57] : memref<4x8x1xf32, #tpu.memory_space<vmem>>, vector<1x8x1xf32>
    %191 = vector.shape_cast %190 : vector<1x8x1xf32> to vector<8x1xf32>
    %192 = vector.broadcast %183 : vector<1x1xf32> to vector<8x1xf32>
    %193 = arith.mulf %191, %192 : vector<8x1xf32>
    %194 = vector.broadcast %193 : vector<8x1xf32> to vector<8x256xf32>
    %195 = arith.addf %189, %194 : vector<8x256xf32>
    %cst_58 = arith.constant 0.000000e+00 : f32
    %196 = vector.broadcast %cst_58 : f32 to vector<8x256xf32>
    %197 = arith.maximumf %195, %196 : vector<8x256xf32>
    %198 = arith.addf %169, %197 : vector<8x256xf32>
    %199 = vector.extract_strided_slice %111 {offsets = [16, 0], sizes = [8, 256], strides = [1, 1]} : vector<32x256xf32> to vector<8x256xf32>
    %200 = vector.extract_strided_slice %115 {offsets = [16, 0], sizes = [8, 256], strides = [1, 1]} : vector<32x256xf32> to vector<8x256xf32>
    %201 = vector.extract_strided_slice %119 {offsets = [16, 0], sizes = [8, 256], strides = [1, 1]} : vector<32x256xf32> to vector<8x256xf32>
    %202 = vector.extract_strided_slice %123 {offsets = [16, 0], sizes = [8, 256], strides = [1, 1]} : vector<32x256xf32> to vector<8x256xf32>
    %203 = vector.extract_strided_slice %107 {offsets = [16, 0], sizes = [8, 256], strides = [1, 1]} : vector<32x256xf32> to vector<8x256xf32>
    %204 = vector.extract_strided_slice %127 {offsets = [16, 0], sizes = [8, 256], strides = [1, 1]} : vector<32x256xf32> to vector<8x256xf32>
    %205 = vector.extract_strided_slice %131 {offsets = [16, 0], sizes = [8, 256], strides = [1, 1]} : vector<32x256xf32> to vector<8x256xf32>
    %206 = vector.extract_strided_slice %135 {offsets = [16, 0], sizes = [8, 256], strides = [1, 1]} : vector<32x256xf32> to vector<8x256xf32>
    %207 = vector.extract_strided_slice %139 {offsets = [16, 0], sizes = [8, 256], strides = [1, 1]} : vector<32x256xf32> to vector<8x256xf32>
    %208 = tpu.concatenate %199, %200, %201, %202, %203, %204, %205, %206, %207 in 0 : vector<8x256xf32>, vector<8x256xf32>, vector<8x256xf32>, vector<8x256xf32>, vector<8x256xf32>, vector<8x256xf32>, vector<8x256xf32>, vector<8x256xf32>, vector<8x256xf32> -> vector<72x256xf32>
    %c2 = arith.constant 2 : index
    %c0_59 = arith.constant 0 : index
    %c0_60 = arith.constant 0 : index
    %209 = vector.load %arg11[%c2, %c0_59, %c0_60] : memref<4x8x72xf32, #tpu.memory_space<vmem>>, vector<1x8x72xf32>
    %210 = vector.shape_cast %209 : vector<1x8x72xf32> to vector<8x72xf32>
    %cst_61 = arith.constant dense<0.000000e+00> : vector<8x256xf32>
    %211 = tpu.matmul %210, %208, %cst_61 {dimension_numbers = #tpu.dot_dimension_numbers<[1], [0], [0], [1], [0, 0, 1, 1], [], []>} : vector<8x72xf32>, vector<72x256xf32>, vector<8x256xf32> -> vector<8x256xf32>
    %212 = vector.extract_strided_slice %63 {offsets = [2, 0], sizes = [1, 1], strides = [1, 1]} : vector<4x1xf32> to vector<1x1xf32>
    %c2_62 = arith.constant 2 : index
    %c0_63 = arith.constant 0 : index
    %c0_64 = arith.constant 0 : index
    %213 = vector.load %arg12[%c2_62, %c0_63, %c0_64] : memref<4x8x1xf32, #tpu.memory_space<vmem>>, vector<1x8x1xf32>
    %214 = vector.shape_cast %213 : vector<1x8x1xf32> to vector<8x1xf32>
    %215 = vector.broadcast %212 : vector<1x1xf32> to vector<8x1xf32>
    %216 = arith.mulf %214, %215 : vector<8x1xf32>
    %217 = vector.broadcast %216 : vector<8x1xf32> to vector<8x256xf32>
    %218 = arith.mulf %211, %217 : vector<8x256xf32>
    %c2_65 = arith.constant 2 : index
    %c0_66 = arith.constant 0 : index
    %c0_67 = arith.constant 0 : index
    %219 = vector.load %arg13[%c2_65, %c0_66, %c0_67] : memref<4x8x1xf32, #tpu.memory_space<vmem>>, vector<1x8x1xf32>
    %220 = vector.shape_cast %219 : vector<1x8x1xf32> to vector<8x1xf32>
    %221 = vector.broadcast %212 : vector<1x1xf32> to vector<8x1xf32>
    %222 = arith.mulf %220, %221 : vector<8x1xf32>
    %223 = vector.broadcast %222 : vector<8x1xf32> to vector<8x256xf32>
    %224 = arith.addf %218, %223 : vector<8x256xf32>
    %cst_68 = arith.constant 0.000000e+00 : f32
    %225 = vector.broadcast %cst_68 : f32 to vector<8x256xf32>
    %226 = arith.maximumf %224, %225 : vector<8x256xf32>
    %227 = arith.addf %198, %226 : vector<8x256xf32>
    %228 = vector.extract_strided_slice %111 {offsets = [24, 0], sizes = [8, 256], strides = [1, 1]} : vector<32x256xf32> to vector<8x256xf32>
    %229 = vector.extract_strided_slice %115 {offsets = [24, 0], sizes = [8, 256], strides = [1, 1]} : vector<32x256xf32> to vector<8x256xf32>
    %230 = vector.extract_strided_slice %119 {offsets = [24, 0], sizes = [8, 256], strides = [1, 1]} : vector<32x256xf32> to vector<8x256xf32>
    %231 = vector.extract_strided_slice %123 {offsets = [24, 0], sizes = [8, 256], strides = [1, 1]} : vector<32x256xf32> to vector<8x256xf32>
    %232 = vector.extract_strided_slice %107 {offsets = [24, 0], sizes = [8, 256], strides = [1, 1]} : vector<32x256xf32> to vector<8x256xf32>
    %233 = vector.extract_strided_slice %127 {offsets = [24, 0], sizes = [8, 256], strides = [1, 1]} : vector<32x256xf32> to vector<8x256xf32>
    %234 = vector.extract_strided_slice %131 {offsets = [24, 0], sizes = [8, 256], strides = [1, 1]} : vector<32x256xf32> to vector<8x256xf32>
    %235 = vector.extract_strided_slice %135 {offsets = [24, 0], sizes = [8, 256], strides = [1, 1]} : vector<32x256xf32> to vector<8x256xf32>
    %236 = vector.extract_strided_slice %139 {offsets = [24, 0], sizes = [8, 256], strides = [1, 1]} : vector<32x256xf32> to vector<8x256xf32>
    %237 = tpu.concatenate %228, %229, %230, %231, %232, %233, %234, %235, %236 in 0 : vector<8x256xf32>, vector<8x256xf32>, vector<8x256xf32>, vector<8x256xf32>, vector<8x256xf32>, vector<8x256xf32>, vector<8x256xf32>, vector<8x256xf32>, vector<8x256xf32> -> vector<72x256xf32>
    %c3 = arith.constant 3 : index
    %c0_69 = arith.constant 0 : index
    %c0_70 = arith.constant 0 : index
    %238 = vector.load %arg11[%c3, %c0_69, %c0_70] : memref<4x8x72xf32, #tpu.memory_space<vmem>>, vector<1x8x72xf32>
    %239 = vector.shape_cast %238 : vector<1x8x72xf32> to vector<8x72xf32>
    %cst_71 = arith.constant dense<0.000000e+00> : vector<8x256xf32>
    %240 = tpu.matmul %239, %237, %cst_71 {dimension_numbers = #tpu.dot_dimension_numbers<[1], [0], [0], [1], [0, 0, 1, 1], [], []>} : vector<8x72xf32>, vector<72x256xf32>, vector<8x256xf32> -> vector<8x256xf32>
    %241 = vector.extract_strided_slice %63 {offsets = [3, 0], sizes = [1, 1], strides = [1, 1]} : vector<4x1xf32> to vector<1x1xf32>
    %c3_72 = arith.constant 3 : index
    %c0_73 = arith.constant 0 : index
    %c0_74 = arith.constant 0 : index
    %242 = vector.load %arg12[%c3_72, %c0_73, %c0_74] : memref<4x8x1xf32, #tpu.memory_space<vmem>>, vector<1x8x1xf32>
    %243 = vector.shape_cast %242 : vector<1x8x1xf32> to vector<8x1xf32>
    %244 = vector.broadcast %241 : vector<1x1xf32> to vector<8x1xf32>
    %245 = arith.mulf %243, %244 : vector<8x1xf32>
    %246 = vector.broadcast %245 : vector<8x1xf32> to vector<8x256xf32>
    %247 = arith.mulf %240, %246 : vector<8x256xf32>
    %c3_75 = arith.constant 3 : index
    %c0_76 = arith.constant 0 : index
    %c0_77 = arith.constant 0 : index
    %248 = vector.load %arg13[%c3_75, %c0_76, %c0_77] : memref<4x8x1xf32, #tpu.memory_space<vmem>>, vector<1x8x1xf32>
    %249 = vector.shape_cast %248 : vector<1x8x1xf32> to vector<8x1xf32>
    %250 = vector.broadcast %241 : vector<1x1xf32> to vector<8x1xf32>
    %251 = arith.mulf %249, %250 : vector<8x1xf32>
    %252 = vector.broadcast %251 : vector<8x1xf32> to vector<8x256xf32>
    %253 = arith.addf %247, %252 : vector<8x256xf32>
    %cst_78 = arith.constant 0.000000e+00 : f32
    %254 = vector.broadcast %cst_78 : f32 to vector<8x256xf32>
    %255 = arith.maximumf %253, %254 : vector<8x256xf32>
    %256 = arith.addf %227, %255 : vector<8x256xf32>
    %c0_79 = arith.constant 0 : index
    %c0_80 = arith.constant 0 : index
    %c0_81 = arith.constant 0 : index
    %257 = vector.load %arg14[%c0_79, %c0_80, %c0_81] : memref<1x8x256xf32, #tpu.memory_space<vmem>>, vector<1x8x256xf32>
    %258 = vector.shape_cast %257 : vector<1x8x256xf32> to vector<8x256xf32>
    %259 = vector.shape_cast %256 : vector<8x256xf32> to vector<1x8x256xf32>
    tpu.vector_store %arg14[%c0_79, %c0_80, %c0_81], %259 {strides = array<i32>} : memref<1x8x256xf32, #tpu.memory_space<vmem>>, vector<1x8x256xf32>,
    return
  }
  func.func @transform_0(%arg0: i32) -> (i32, i32, i32) {
    %c0_i32 = arith.constant 0 : i32
    %c0_i32_0 = arith.constant 0 : i32
    %c0_i32_1 = arith.constant 0 : i32
    return %arg0, %c0_i32, %c0_i32_0 : i32, i32, i32
  }
  func.func @transform_1(%arg0: i32) -> (i32, i32, i32) {
    %c0_i32 = arith.constant 0 : i32
    %c0_i32_0 = arith.constant 0 : i32
    %c0_i32_1 = arith.constant 0 : i32
    return %arg0, %c0_i32, %c0_i32_0 : i32, i32, i32
  }
  func.func @transform_2(%arg0: i32) -> (i32, i32) {
    %c0_i32 = arith.constant 0 : i32
    %c0_i32_0 = arith.constant 0 : i32
    %c0_i32_1 = arith.constant 0 : i32
    return %c0_i32, %c0_i32_0 : i32, i32
  }
  func.func @transform_3(%arg0: i32) -> (i32, i32) {
    %c0_i32 = arith.constant 0 : i32
    %c0_i32_0 = arith.constant 0 : i32
    %c0_i32_1 = arith.constant 0 : i32
    return %c0_i32, %c0_i32_0 : i32, i32
  }
  func.func @transform_4(%arg0: i32) -> (i32, i32) {
    %c0_i32 = arith.constant 0 : i32
    %c0_i32_0 = arith.constant 0 : i32
    %c0_i32_1 = arith.constant 0 : i32
    return %c0_i32, %c0_i32_0 : i32, i32
  }
  func.func @transform_5(%arg0: i32) -> (i32, i32) {
    %c0_i32 = arith.constant 0 : i32
    %c0_i32_0 = arith.constant 0 : i32
    %c0_i32_1 = arith.constant 0 : i32
    return %c0_i32, %c0_i32_0 : i32, i32
  }
  func.func @transform_6(%arg0: i32) -> (i32, i32) {
    %c0_i32 = arith.constant 0 : i32
    %c0_i32_0 = arith.constant 0 : i32
    %c0_i32_1 = arith.constant 0 : i32
    return %c0_i32, %c0_i32_0 : i32, i32
  }
  func.func @transform_7(%arg0: i32) -> (i32, i32) {
    %c0_i32 = arith.constant 0 : i32
    %c0_i32_0 = arith.constant 0 : i32
    %c0_i32_1 = arith.constant 0 : i32
    return %c0_i32, %c0_i32_0 : i32, i32
  }
  func.func @transform_8(%arg0: i32) -> (i32, i32) {
    %c0_i32 = arith.constant 0 : i32
    %c0_i32_0 = arith.constant 0 : i32
    %c0_i32_1 = arith.constant 0 : i32
    return %c0_i32, %c0_i32_0 : i32, i32
  }
  func.func @transform_9(%arg0: i32) -> (i32, i32) {
    %c0_i32 = arith.constant 0 : i32
    %c0_i32_0 = arith.constant 0 : i32
    %c0_i32_1 = arith.constant 0 : i32
    return %c0_i32, %c0_i32_0 : i32, i32
  }
  func.func @transform_10(%arg0: i32) -> (i32, i32, i32) {
    %c0_i32 = arith.constant 0 : i32
    %c0_i32_0 = arith.constant 0 : i32
    %c0_i32_1 = arith.constant 0 : i32
    %c0_i32_2 = arith.constant 0 : i32
    return %c0_i32, %c0_i32_0, %c0_i32_1 : i32, i32, i32
  }
  func.func @transform_11(%arg0: i32) -> (i32, i32, i32) {
    %c0_i32 = arith.constant 0 : i32
    %c0_i32_0 = arith.constant 0 : i32
    %c0_i32_1 = arith.constant 0 : i32
    %c0_i32_2 = arith.constant 0 : i32
    return %c0_i32, %c0_i32_0, %c0_i32_1 : i32, i32, i32
  }
  func.func @transform_12(%arg0: i32) -> (i32, i32, i32) {
    %c0_i32 = arith.constant 0 : i32
    %c0_i32_0 = arith.constant 0 : i32
    %c0_i32_1 = arith.constant 0 : i32
    %c0_i32_2 = arith.constant 0 : i32
    return %c0_i32, %c0_i32_0, %c0_i32_1 : i32, i32, i32
  }
  func.func @transform_13(%arg0: i32) -> (i32, i32, i32) {
    %c0_i32 = arith.constant 0 : i32
    %c0_i32_0 = arith.constant 0 : i32
    %c0_i32_1 = arith.constant 0 : i32
    return %arg0, %c0_i32, %c0_i32_0 : i32, i32, i32
  }
}

</mosaic_0001>

<llo_original>
// kernel: tpu_custom_call.1
$region0: #{tpu_custom_call.1}
  #allocation0 [shape = 'u32[]', space=smem, size = 0x4, offset = 0x4, fixed_abs, tag = 'smem constant byte address 0x4 - core index']
  #allocation1 [shape = 'u32[72,128]{1,0:T(1,128)}', space=vmem, size = 0x9000, scoped, tag = 'internal scratch']
  %s0 = inlined_call_operand.vmem [shape: f32[2,32,8], index: 0, kind: input, shape index: {}]
  %s1 = inlined_call_operand.vmem [shape: f32[2,4,256], index: 1, kind: input, shape index: {}]
  %s2 = inlined_call_operand.vmem [shape: f32[8,16], index: 2, kind: input, shape index: {}]
  %s3 = inlined_call_operand.vmem [shape: f32[16,8], index: 3, kind: input, shape index: {}]
  %s4 = inlined_call_operand.vmem [shape: f32[9,256], index: 4, kind: input, shape index: {}]
  %s5 = inlined_call_operand.vmem [shape: f32[4,8], index: 5, kind: input, shape index: {}]
  %s6 = inlined_call_operand.vmem [shape: f32[4,1], index: 6, kind: input, shape index: {}]
  %s7 = inlined_call_operand.vmem [shape: f32[32,72], index: 7, kind: input, shape index: {}]
  %s8 = inlined_call_operand.vmem [shape: f32[32,1], index: 8, kind: input, shape index: {}]
  %s9 = inlined_call_operand.vmem [shape: f32[32,1], index: 9, kind: input, shape index: {}]
  %s10 = inlined_call_operand.vmem [shape: f32[4,8,72], index: 10, kind: input, shape index: {}]
  %s11 = inlined_call_operand.vmem [shape: f32[4,8,1], index: 11, kind: input, shape index: {}]
  %s12 = inlined_call_operand.vmem [shape: f32[4,8,1], index: 12, kind: input, shape index: {}]
  %s13 = inlined_call_operand.hbm [shape: f32[2,8,256], index: 13, kind: output, shape index: {}]
  %s14 = sld [smem:[#allocation0]]
  $region85: #{tpu_custom_call.1} parent=0
    _
  %s16 = ssub.s32 1, %s14
  %s17 = scalar_select 0, %s16, %s14
  $region1: #{tpu_custom_call.1} parent=0
    #allocation2 [shape = 'u8[16384]{0}', space=vmem, size = 0x4000, scoped, tag = 'output window, operand 0']
    #allocation3 [shape = 's32[2]{0}', space=sflag, size = 0x8, scoped, tag = 'scoped memory for tpu_custom_call.1']
    %18 = vsyncpa [#allocation3], 0
    %s19 = scalar_lea.sflag [#allocation3], 1
    %20 = vsyncpa %s19, 0
    loop: start=0, step=1, limit=4
    $region2: #{tpu_custom_call.1} parent=1 // loop_pre_header
      _
    $region3: #{tpu_custom_call.1} parent=1 // loop_header
      %s22 = sphi 0, %s26
      %p23 = scmp.ge.s32.totalorder %s22, 4
      %s32 = sphi 0, %s34
      %s35 = sphi 0, %s32
      %s36 = sphi 0, %s35
      %s52 = sphi 0, %s36
      %s58 = sphi 0, %s60
      %s61 = sphi 0, %s58
      %s62 = sphi 0, %s61
      %s78 = sphi 0, %s62
      %s82 = sphi 0, %s82
      %s84 = sphi 0, %s82
      %s85 = sphi 0, %s84
      %s99 = sphi 0, %s85
      %s103 = sphi 0, %s103
      %s105 = sphi 0, %s103
      %s106 = sphi 0, %s105
      %s120 = sphi 0, %s106
      %s124 = sphi 0, %s124
      %s126 = sphi 0, %s124
      %s127 = sphi 0, %s126
      %s141 = sphi 0, %s127
      %s145 = sphi 0, %s145
      %s147 = sphi 0, %s145
      %s148 = sphi 0, %s147
      %s162 = sphi 0, %s148
      %s166 = sphi 0, %s166
      %s168 = sphi 0, %s166
      %s169 = sphi 0, %s168
      %s183 = sphi 0, %s169
      %s187 = sphi 0, %s187
      %s189 = sphi 0, %s187
      %s190 = sphi 0, %s189
      %s204 = sphi 0, %s190
      %s208 = sphi 0, %s208
      %s210 = sphi 0, %s208
      %s211 = sphi 0, %s210
      %s225 = sphi 0, %s211
      %s229 = sphi 0, %s229
      %s231 = sphi 0, %s229
      %s232 = sphi 0, %s231
      %s246 = sphi 0, %s232
      %s250 = sphi 0, %s250
      %s252 = sphi 0, %s250
      %s253 = sphi 0, %s252
      %s267 = sphi 0, %s253
      %s271 = sphi 0, %s271
      %s273 = sphi 0, %s271
      %s274 = sphi 0, %s273
      %s288 = sphi 0, %s274
      %s292 = sphi 0, %s292
      %s294 = sphi 0, %s292
      %s295 = sphi 0, %s294
      %s309 = sphi 0, %s295
      %s315 = sphi 0, %s317
      %s318 = sphi 0, %s315
      %s319 = sphi 0, %s318
      %s335 = sphi 0, %s319
    $region4: #{tpu_custom_call.1} parent=1 // loop_header_branch
      %25 = sbr.rel (%p23) target = $region8
    $region5: #{tpu_custom_call.1} parent=1 // loop_body
      %s27 = ssub.s32 %s22, 1
      %s28 = ssub.s32 %s22, 2
      %s29 = sadd.s32 %s22, 1
      %s30 = ssub.s32 %s22, %s29
      %p31 = scmp.eq.s32.totalorder %s30, 0
      %s33 = sadd.s32 %s32, 1
      %s34 = scalar_select %p31, %s32, %s33
      %p37 = pneg %p31
      %p38 = scmp.eq.s32.totalorder %s22, 1
      %p39 = por %p37, %p38
      %p40 = scmp.ne.s32.totalorder %s32, %s35
      %p41 = scmp.eq.s32.totalorder %s22, 0
      %p42 = por %p40, %p41
      %p43 = scmp.ne.s32.totalorder %s32, %s35
      %p44 = scmp.eq.s32.totalorder %s27, 1
      %p45 = por %p43, %p44
      %p46 = scmp.ne.s32.totalorder %s35, %s36
      %p47 = scmp.eq.s32.totalorder %s27, 0
      %p48 = por %p46, %p47
      %p49 = scmp.ne.s32.totalorder %s35, %s36
      %p50 = scmp.eq.s32.totalorder %s28, 1
      %p51 = por %p49, %p50
      %p53 = scmp.ne.s32.totalorder %s36, %s52
      %p54 = scmp.eq.s32.totalorder %s28, 0
      %p55 = por %p53, %p54
      %s56 = ssub.s32 %s22, %s29
      %p57 = scmp.eq.s32.totalorder %s56, 0
      %s59 = sadd.s32 %s58, 1
      %s60 = scalar_select %p57, %s58, %s59
      %p63 = pneg %p57
      %p64 = scmp.eq.s32.totalorder %s22, 1
      %p65 = por %p63, %p64
      %p66 = scmp.ne.s32.totalorder %s58, %s61
      %p67 = scmp.eq.s32.totalorder %s22, 0
      %p68 = por %p66, %p67
      %p69 = scmp.ne.s32.totalorder %s58, %s61
      %p70 = scmp.eq.s32.totalorder %s27, 1
      %p71 = por %p69, %p70
      %p72 = scmp.ne.s32.totalorder %s61, %s62
      %p73 = scmp.eq.s32.totalorder %s27, 0
      %p74 = por %p72, %p73
      %p75 = scmp.ne.s32.totalorder %s61, %s62
      %p76 = scmp.eq.s32.totalorder %s28, 1
      %p77 = por %p75, %p76
      %p79 = scmp.ne.s32.totalorder %s62, %s78
      %p80 = scmp.eq.s32.totalorder %s28, 0
      %p81 = por %p79, %p80
      %s83 = sadd.s32 %s82, 1
      %p86 = scmp.eq.s32.totalorder %s22, 1
      %p87 = scmp.ne.s32.totalorder %s82, %s84
      %p88 = scmp.eq.s32.totalorder %s22, 0
      %p89 = por %p87, %p88
      %p90 = scmp.ne.s32.totalorder %s82, %s84
      %p91 = scmp.eq.s32.totalorder %s27, 1
      %p92 = por %p90, %p91
      %p93 = scmp.ne.s32.totalorder %s84, %s85
      %p94 = scmp.eq.s32.totalorder %s27, 0
      %p95 = por %p93, %p94
      %p96 = scmp.ne.s32.totalorder %s84, %s85
      %p97 = scmp.eq.s32.totalorder %s28, 1
      %p98 = por %p96, %p97
      %p100 = scmp.ne.s32.totalorder %s85, %s99
      %p101 = scmp.eq.s32.totalorder %s28, 0
      %p102 = por %p100, %p101
      %s104 = sadd.s32 %s103, 1
      %p107 = scmp.eq.s32.totalorder %s22, 1
      %p108 = scmp.ne.s32.totalorder %s103, %s105
      %p109 = scmp.eq.s32.totalorder %s22, 0
      %p110 = por %p108, %p109
      %p111 = scmp.ne.s32.totalorder %s103, %s105
      %p112 = scmp.eq.s32.totalorder %s27, 1
      %p113 = por %p111, %p112
      %p114 = scmp.ne.s32.totalorder %s105, %s106
      %p115 = scmp.eq.s32.totalorder %s27, 0
      %p116 = por %p114, %p115
      %p117 = scmp.ne.s32.totalorder %s105, %s106
      %p118 = scmp.eq.s32.totalorder %s28, 1
      %p119 = por %p117, %p118
      %p121 = scmp.ne.s32.totalorder %s106, %s120
      %p122 = scmp.eq.s32.totalorder %s28, 0
      %p123 = por %p121, %p122
      %s125 = sadd.s32 %s124, 1
      %p128 = scmp.eq.s32.totalorder %s22, 1
      %p129 = scmp.ne.s32.totalorder %s124, %s126
      %p130 = scmp.eq.s32.totalorder %s22, 0
      %p131 = por %p129, %p130
      %p132 = scmp.ne.s32.totalorder %s124, %s126
      %p133 = scmp.eq.s32.totalorder %s27, 1
      %p134 = por %p132, %p133
      %p135 = scmp.ne.s32.totalorder %s126, %s127
      %p136 = scmp.eq.s32.totalorder %s27, 0
      %p137 = por %p135, %p136
      %p138 = scmp.ne.s32.totalorder %s126, %s127
      %p139 = scmp.eq.s32.totalorder %s28, 1
      %p140 = por %p138, %p139
      %p142 = scmp.ne.s32.totalorder %s127, %s141
      %p143 = scmp.eq.s32.totalorder %s28, 0
      %p144 = por %p142, %p143
      %s146 = sadd.s32 %s145, 1
      %p149 = scmp.eq.s32.totalorder %s22, 1
      %p150 = scmp.ne.s32.totalorder %s145, %s147
      %p151 = scmp.eq.s32.totalorder %s22, 0
      %p152 = por %p150, %p151
      %p153 = scmp.ne.s32.totalorder %s145, %s147
      %p154 = scmp.eq.s32.totalorder %s27, 1
      %p155 = por %p153, %p154
      %p156 = scmp.ne.s32.totalorder %s147, %s148
      %p157 = scmp.eq.s32.totalorder %s27, 0
      %p158 = por %p156, %p157
      %p159 = scmp.ne.s32.totalorder %s147, %s148
      %p160 = scmp.eq.s32.totalorder %s28, 1
      %p161 = por %p159, %p160
      %p163 = scmp.ne.s32.totalorder %s148, %s162
      %p164 = scmp.eq.s32.totalorder %s28, 0
      %p165 = por %p163, %p164
      %s167 = sadd.s32 %s166, 1
      %p170 = scmp.eq.s32.totalorder %s22, 1
      %p171 = scmp.ne.s32.totalorder %s166, %s168
      %p172 = scmp.eq.s32.totalorder %s22, 0
      %p173 = por %p171, %p172
      %p174 = scmp.ne.s32.totalorder %s166, %s168
      %p175 = scmp.eq.s32.totalorder %s27, 1
      %p176 = por %p174, %p175
      %p177 = scmp.ne.s32.totalorder %s168, %s169
      %p178 = scmp.eq.s32.totalorder %s27, 0
      %p179 = por %p177, %p178
      %p180 = scmp.ne.s32.totalorder %s168, %s169
      %p181 = scmp.eq.s32.totalorder %s28, 1
      %p182 = por %p180, %p181
      %p184 = scmp.ne.s32.totalorder %s169, %s183
      %p185 = scmp.eq.s32.totalorder %s28, 0
      %p186 = por %p184, %p185
      %s188 = sadd.s32 %s187, 1
      %p191 = scmp.eq.s32.totalorder %s22, 1
      %p192 = scmp.ne.s32.totalorder %s187, %s189
      %p193 = scmp.eq.s32.totalorder %s22, 0
      %p194 = por %p192, %p193
      %p195 = scmp.ne.s32.totalorder %s187, %s189
      %p196 = scmp.eq.s32.totalorder %s27, 1
      %p197 = por %p195, %p196
      %p198 = scmp.ne.s32.totalorder %s189, %s190
      %p199 = scmp.eq.s32.totalorder %s27, 0
      %p200 = por %p198, %p199
      %p201 = scmp.ne.s32.totalorder %s189, %s190
      %p202 = scmp.eq.s32.totalorder %s28, 1
      %p203 = por %p201, %p202
      %p205 = scmp.ne.s32.totalorder %s190, %s204
      %p206 = scmp.eq.s32.totalorder %s28, 0
      %p207 = por %p205, %p206
      %s209 = sadd.s32 %s208, 1
      %p212 = scmp.eq.s32.totalorder %s22, 1
      %p213 = scmp.ne.s32.totalorder %s208, %s210
      %p214 = scmp.eq.s32.totalorder %s22, 0
      %p215 = por %p213, %p214
      %p216 = scmp.ne.s32.totalorder %s208, %s210
      %p217 = scmp.eq.s32.totalorder %s27, 1
      %p218 = por %p216, %p217
      %p219 = scmp.ne.s32.totalorder %s210, %s211
      %p220 = scmp.eq.s32.totalorder %s27, 0
      %p221 = por %p219, %p220
      %p222 = scmp.ne.s32.totalorder %s210, %s211
      %p223 = scmp.eq.s32.totalorder %s28, 1
      %p224 = por %p222, %p223
      %p226 = scmp.ne.s32.totalorder %s211, %s225
      %p227 = scmp.eq.s32.totalorder %s28, 0
      %p228 = por %p226, %p227
      %s230 = sadd.s32 %s229, 1
      %p233 = scmp.eq.s32.totalorder %s22, 1
      %p234 = scmp.ne.s32.totalorder %s229, %s231
      %p235 = scmp.eq.s32.totalorder %s22, 0
      %p236 = por %p234, %p235
      %p237 = scmp.ne.s32.totalorder %s229, %s231
      %p238 = scmp.eq.s32.totalorder %s27, 1
      %p239 = por %p237, %p238
      %p240 = scmp.ne.s32.totalorder %s231, %s232
      %p241 = scmp.eq.s32.totalorder %s27, 0
      %p242 = por %p240, %p241
      %p243 = scmp.ne.s32.totalorder %s231, %s232
      %p244 = scmp.eq.s32.totalorder %s28, 1
      %p245 = por %p243, %p244
      %p247 = scmp.ne.s32.totalorder %s232, %s246
      %p248 = scmp.eq.s32.totalorder %s28, 0
      %p249 = por %p247, %p248
      %s251 = sadd.s32 %s250, 1
      %p254 = scmp.eq.s32.totalorder %s22, 1
      %p255 = scmp.ne.s32.totalorder %s250, %s252
      %p256 = scmp.eq.s32.totalorder %s22, 0
      %p257 = por %p255, %p256
      %p258 = scmp.ne.s32.totalorder %s250, %s252
      %p259 = scmp.eq.s32.totalorder %s27, 1
      %p260 = por %p258, %p259
      %p261 = scmp.ne.s32.totalorder %s252, %s253
      %p262 = scmp.eq.s32.totalorder %s27, 0
      %p263 = por %p261, %p262
      %p264 = scmp.ne.s32.totalorder %s252, %s253
      %p265 = scmp.eq.s32.totalorder %s28, 1
      %p266 = por %p264, %p265
      %p268 = scmp.ne.s32.totalorder %s253, %s267
      %p269 = scmp.eq.s32.totalorder %s28, 0
      %p270 = por %p268, %p269
      %s272 = sadd.s32 %s271, 1
      %p275 = scmp.eq.s32.totalorder %s22, 1
      %p276 = scmp.ne.s32.totalorder %s271, %s273
      %p277 = scmp.eq.s32.totalorder %s22, 0
      %p278 = por %p276, %p277
      %p279 = scmp.ne.s32.totalorder %s271, %s273
      %p280 = scmp.eq.s32.totalorder %s27, 1
      %p281 = por %p279, %p280
      %p282 = scmp.ne.s32.totalorder %s273, %s274
      %p283 = scmp.eq.s32.totalorder %s27, 0
      %p284 = por %p282, %p283
      %p285 = scmp.ne.s32.totalorder %s273, %s274
      %p286 = scmp.eq.s32.totalorder %s28, 1
      %p287 = por %p285, %p286
      %p289 = scmp.ne.s32.totalorder %s274, %s288
      %p290 = scmp.eq.s32.totalorder %s28, 0
      %p291 = por %p289, %p290
      %s293 = sadd.s32 %s292, 1
      %p296 = scmp.eq.s32.totalorder %s22, 1
      %p297 = scmp.ne.s32.totalorder %s292, %s294
      %p298 = scmp.eq.s32.totalorder %s22, 0
      %p299 = por %p297, %p298
      %p300 = scmp.ne.s32.totalorder %s292, %s294
      %p301 = scmp.eq.s32.totalorder %s27, 1
      %p302 = por %p300, %p301
      %p303 = scmp.ne.s32.totalorder %s294, %s295
      %p304 = scmp.eq.s32.totalorder %s27, 0
      %p305 = por %p303, %p304
      %p306 = scmp.ne.s32.totalorder %s294, %s295
      %p307 = scmp.eq.s32.totalorder %s28, 1
      %p308 = por %p306, %p307
      %p310 = scmp.ne.s32.totalorder %s295, %s309
      %p311 = scmp.eq.s32.totalorder %s28, 0
      %p312 = por %p310, %p311
      %s313 = ssub.s32 %s22, %s29
      %p314 = scmp.eq.s32.totalorder %s313, 0
      %s316 = sadd.s32 %s315, 1
      %s317 = scalar_select %p314, %s315, %s316
      %p320 = pneg %p314
      %p321 = scmp.eq.s32.totalorder %s22, 1
      %p322 = por %p320, %p321
      %p323 = scmp.ne.s32.totalorder %s315, %s318
      %p324 = scmp.eq.s32.totalorder %s22, 0
      %p325 = por %p323, %p324
      %p326 = scmp.ne.s32.totalorder %s315, %s318
      %p327 = scmp.eq.s32.totalorder %s27, 1
      %p328 = por %p326, %p327
      %p329 = scmp.ne.s32.totalorder %s318, %s319
      %p330 = scmp.eq.s32.totalorder %s27, 0
      %p331 = por %p329, %p330
      %p332 = scmp.ne.s32.totalorder %s318, %s319
      %p333 = scmp.eq.s32.totalorder %s28, 1
      %p334 = por %p332, %p333
      %p336 = scmp.ne.s32.totalorder %s319, %s335
      %p337 = scmp.eq.s32.totalorder %s28, 0
      %p338 = por %p336, %p337
      %p339 = scmp.le.s32.totalorder 1, %s22
      %p340 = scmp.lt.s32.totalorder %s22, 3
      %p341 = pnand %p339, %p340
      %p342 = pneg %p341
      // Predicated region
      $region9: #{tpu_custom_call.1} parent=5 // pred_check
        _
      $region10: #{tpu_custom_call.1} parent=5 // pred_check_branch
        %344 = sbr.rel (%p341) target = $region12
      $region11: #{tpu_custom_call.1} parent=5 // pred_region
        %s345 = ssub.s32 %s22, 1
        // Predicated region
        $region13: #{tpu_custom_call.1} parent=11 // pred_check
          %p346 = pneg %p95
        $region14: #{tpu_custom_call.1} parent=11 // pred_check_branch
          %348 = sbr.rel (%p346) target = $region16
        $region15: #{tpu_custom_call.1} parent=11 // pred_region
          _
        $region16: #{tpu_custom_call.1} parent=11 // pred_fallthru
          _
        // Predicated region
        $region17: #{tpu_custom_call.1} parent=11 // pred_check
          %p349 = pneg %p116
        $region18: #{tpu_custom_call.1} parent=11 // pred_check_branch
          %351 = sbr.rel (%p349) target = $region20
        $region19: #{tpu_custom_call.1} parent=11 // pred_region
          _
        $region20: #{tpu_custom_call.1} parent=11 // pred_fallthru
          _
        // Predicated region
        $region21: #{tpu_custom_call.1} parent=11 // pred_check
          %p352 = pneg %p137
        $region22: #{tpu_custom_call.1} parent=11 // pred_check_branch
          %354 = sbr.rel (%p352) target = $region24
        $region23: #{tpu_custom_call.1} parent=11 // pred_region
          _
        $region24: #{tpu_custom_call.1} parent=11 // pred_fallthru
          _
        // Predicated region
        $region25: #{tpu_custom_call.1} parent=11 // pred_check
          %p355 = pneg %p158
        $region26: #{tpu_custom_call.1} parent=11 // pred_check_branch
          %357 = sbr.rel (%p355) target = $region28
        $region27: #{tpu_custom_call.1} parent=11 // pred_region
          _
        $region28: #{tpu_custom_call.1} parent=11 // pred_fallthru
          _
        // Predicated region
        $region29: #{tpu_custom_call.1} parent=11 // pred_check
          %p358 = pneg %p179
        $region30: #{tpu_custom_call.1} parent=11 // pred_check_branch
          %360 = sbr.rel (%p358) target = $region32
        $region31: #{tpu_custom_call.1} parent=11 // pred_region
          _
        $region32: #{tpu_custom_call.1} parent=11 // pred_fallthru
          _
        // Predicated region
        $region33: #{tpu_custom_call.1} parent=11 // pred_check
          %p361 = pneg %p200
        $region34: #{tpu_custom_call.1} parent=11 // pred_check_branch
          %363 = sbr.rel (%p361) target = $region36
        $region35: #{tpu_custom_call.1} parent=11 // pred_region
          _
        $region36: #{tpu_custom_call.1} parent=11 // pred_fallthru
          _
        // Predicated region
        $region37: #{tpu_custom_call.1} parent=11 // pred_check
          %p364 = pneg %p221
        $region38: #{tpu_custom_call.1} parent=11 // pred_check_branch
          %366 = sbr.rel (%p364) target = $region40
        $region39: #{tpu_custom_call.1} parent=11 // pred_region
          _
        $region40: #{tpu_custom_call.1} parent=11 // pred_fallthru
          _
        // Predicated region
        $region41: #{tpu_custom_call.1} parent=11 // pred_check
          %p367 = pneg %p242
        $region42: #{tpu_custom_call.1} parent=11 // pred_check_branch
          %369 = sbr.rel (%p367) target = $region44
        $region43: #{tpu_custom_call.1} parent=11 // pred_region
          _
        $region44: #{tpu_custom_call.1} parent=11 // pred_fallthru
          _
        // Predicated region
        $region45: #{tpu_custom_call.1} parent=11 // pred_check
          %p370 = pneg %p263
        $region46: #{tpu_custom_call.1} parent=11 // pred_check_branch
          %372 = sbr.rel (%p370) target = $region48
        $region47: #{tpu_custom_call.1} parent=11 // pred_region
          _
        $region48: #{tpu_custom_call.1} parent=11 // pred_fallthru
          _
        // Predicated region
        $region49: #{tpu_custom_call.1} parent=11 // pred_check
          %p373 = pneg %p284
        $region50: #{tpu_custom_call.1} parent=11 // pred_check_branch
          %375 = sbr.rel (%p373) target = $region52
        $region51: #{tpu_custom_call.1} parent=11 // pred_region
          _
        $region52: #{tpu_custom_call.1} parent=11 // pred_fallthru
          _
        // Predicated region
        $region53: #{tpu_custom_call.1} parent=11 // pred_check
          %p376 = pneg %p305
        $region54: #{tpu_custom_call.1} parent=11 // pred_check_branch
          %378 = sbr.rel (%p376) target = $region56
        $region55: #{tpu_custom_call.1} parent=11 // pred_region
          _
        $region56: #{tpu_custom_call.1} parent=11 // pred_fallthru
          _
      $region12: #{tpu_custom_call.1} parent=5 // pred_fallthru
        _
      %p379 = scmp.lt.s32.totalorder %s22, 2
      // Predicated region
      $region57: #{tpu_custom_call.1} parent=5 // pred_check
        %p380 = pneg %p379
      $region58: #{tpu_custom_call.1} parent=5 // pred_check_branch
        %382 = sbr.rel (%p380) target = $region60
      $region59: #{tpu_custom_call.1} parent=5 // pred_region
        // Predicated region
        $region61: #{tpu_custom_call.1} parent=59 // pred_check
          %p383 = pneg %p42
        $region62: #{tpu_custom_call.1} parent=59 // pred_check_branch
          %385 = sbr.rel (%p383) target = $region64
        $region63: #{tpu_custom_call.1} parent=59 // pred_region
          %p386 = scmp.lt.s32.totalorder %s22, 1
          %s387 = scalar_select %p386, %s22, 1
          %s388 = smul.addr %s387, 4
          %s389 = smul.addr %s388, 8
          %s390 = scalar_lea.vmem %s0, %s389
        $region64: #{tpu_custom_call.1} parent=59 // pred_fallthru
          _
        // Predicated region
        $region65: #{tpu_custom_call.1} parent=59 // pred_check
          %p391 = pneg %p68
        $region66: #{tpu_custom_call.1} parent=59 // pred_check_branch
          %393 = sbr.rel (%p391) target = $region68
        $region67: #{tpu_custom_call.1} parent=59 // pred_region
          %p394 = scmp.lt.s32.totalorder %s22, 1
          %s395 = scalar_select %p394, %s22, 1
          %s396 = smul.addr %s395, 2
          %s397 = smul.addr %s396, 4
          %s398 = scalar_lea.vmem %s1, %s397
        $region68: #{tpu_custom_call.1} parent=59 // pred_fallthru
          _
      $region60: #{tpu_custom_call.1} parent=5 // pred_fallthru
        _
      %p399 = scmp.le.s32.totalorder 1, %s22
      %p400 = scmp.lt.s32.totalorder %s22, 3
      %p401 = pnand %p399, %p400
      %p402 = pneg %p401
      // Predicated region
      $region69: #{tpu_custom_call.1} parent=5 // pred_check
        _
      $region70: #{tpu_custom_call.1} parent=5 // pred_check_branch
        %404 = sbr.rel (%p401) target = $region72
      $region71: #{tpu_custom_call.1} parent=5 // pred_region
        %s405 = ssub.s32 %s22, 1
        %p406 = scmp.lt.s32.totalorder %s27, 1
        %s407 = scalar_select %p406, %s27, 1
        %s408 = smul.addr %s407, 4
        %s409 = smul.addr %s408, 8
        %s410 = scalar_lea.vmem %s0, %s409
        %p411 = pneg %p48
        %p412 = pneg %p45
        %p413 = scmp.lt.s32.totalorder %s27, 1
        %s414 = scalar_select %p413, %s27, 1
        %s415 = smul.addr %s414, 2
        %s416 = smul.addr %s415, 4
        %s417 = scalar_lea.vmem %s1, %s416
        %p418 = pneg %p74
        %p419 = pneg %p71
        %p420 = pneg %p95
        %p421 = pneg %p92
        %p422 = pneg %p116
        %p423 = pneg %p113
        %p424 = pneg %p137
        %p425 = pneg %p134
        %p426 = pneg %p158
        %p427 = pneg %p155
        %p428 = pneg %p179
        %p429 = pneg %p176
        %p430 = pneg %p200
        %p431 = pneg %p197
        %p432 = pneg %p221
        %p433 = pneg %p218
        %p434 = pneg %p242
        %p435 = pneg %p239
        %p436 = pneg %p263
        %p437 = pneg %p260
        %p438 = pneg %p284
        %p439 = pneg %p281
        %p440 = pneg %p305
        %p441 = pneg %p302
        %p442 = pneg %p331
        %p443 = pneg %p328
        %s444 = sand.u32 %s318, 1
        %s445 = scalar_lea.sflag [#allocation3], %s444
        %s446 = sand.u32 %s318, 1
        %s447 = smul.addr %s446, 16
        %s448 = scalar_lea.vmem [#allocation2], %s447
        %p449 = scmp.lt.s32.totalorder %s27, 1
        %s450 = scalar_select %p449, %s27, 1
        %s451 = smul.addr %s450, 4
        %s452 = smul.addr %s451, 8
        %s453 = scalar_lea.vmem %s0, %s452
        %p454 = scmp.lt.s32.totalorder %s27, 1
        %s455 = scalar_select %p454, %s27, 1
        %s456 = smul.addr %s455, 2
        %s457 = smul.addr %s456, 4
        %s458 = scalar_lea.vmem %s1, %s457
        %v459 = vld [vmem:[%s453] sm:$0xff]
        %v460 = vld [vmem:[%s453 + $0x8] sm:$0xff]
        %v461 = vld [vmem:[%s453 + $0x10] sm:$0xff]
        %v462 = vld [vmem:[%s453 + $0x18] sm:$0xff]
        %v463 = vld [vmem:[%s2] sm:$0xff]
        %vm464 = vcmask 64512
        %v466 = vsel %vm464, %v459, 0
        %v469 = vsel %vm464, %v460, 0
        %v472 = vsel %vm464, %v461, 0
        %v475 = vsel %vm464, %v462, 0
        %477 = vmatpush.msra.mxu0 0.0
        %478 = vmatpush.msra.mxu0 0.0
        %479 = vmatpush.msra.mxu0 0.0
        %480 = vmatpush.msra.mxu0 0.0
        %481 = vmatpush.msra.mxu0 0.0
        %482 = vmatpush.msra.mxu0 0.0
        %483 = vmatpush.msra.mxu0 0.0
        %484 = vmatpush.msra.mxu0 0.0
        %485 = vmatpush.msra.mxu0 0.0
        %486 = vmatpush.msra.mxu0 0.0
        %487 = vmatpush.msra.mxu0 0.0
        %488 = vmatpush.msra.mxu0 0.0
        %489 = vmatpush.msra.mxu0 0.0
        %490 = vmatpush.msra.mxu0 0.0
        %491 = vmatpush.msra.mxu0 0.0
        %492 = vmatpush.msra.mxu0 %v463
        %493 = vmatmul.f32.gmra.mxu0 %v466
        %v494 = vpop.f32.mrf.mxu0
        %v495 = vadd.f32 0.0, %v494
        %496 = vmatmul.f32.gmra.mxu0 %v469
        %v497 = vpop.f32.mrf.mxu0
        %v498 = vadd.f32 0.0, %v497
        %499 = vmatmul.f32.gmra.mxu0 %v472
        %v500 = vpop.f32.mrf.mxu0
        %v501 = vadd.f32 0.0, %v500
        %502 = vmatmul.f32.gmra.mxu0 %v475
        %v503 = vpop.f32.mrf.mxu0
        %v504 = vadd.f32 0.0, %v503
        %505 = vdwg.mxu0
        %v506 = vld [vmem:[%s3] sm:$0xff]
        %v507 = vld [vmem:[%s3 + $0x8] sm:$0xff]
        %v509 = vsel %vm464, %v506, 0
        %v512 = vsel %vm464, %v507, 0
        %514 = vmatpush.msra.mxu0 0.0
        %515 = vmatpush.msra.mxu0 0.0
        %516 = vmatpush.msra.mxu0 0.0
        %517 = vmatpush.msra.mxu0 0.0
        %518 = vmatpush.msra.mxu0 0.0
        %519 = vmatpush.msra.mxu0 0.0
        %520 = vmatpush.msra.mxu0 0.0
        %521 = vmatpush.msra.mxu0 0.0
        %522 = vmatpush.msra.mxu0 0.0
        %523 = vmatpush.msra.mxu0 0.0
        %524 = vmatpush.msra.mxu0 0.0
        %525 = vmatpush.msra.mxu0 0.0
        %526 = vmatpush.msra.mxu0 0.0
        %527 = vmatpush.msra.mxu0 0.0
        %528 = vmatpush.msra.mxu0 0.0
        %529 = vmatpush.msra.mxu0 %v495
        %530 = vmatmul.f32.gmra.mxu0 %v509
        %v531 = vpop.f32.mrf.mxu0
        %v532 = vadd.f32 0.0, %v531
        %533 = vmatmul.f32.gmra.mxu0 %v512
        %v534 = vpop.f32.mrf.mxu0
        %v535 = vadd.f32 0.0, %v534
        %536 = vdwg.mxu0
        %537 = vmatpush.msra.mxu0 0.0
        %538 = vmatpush.msra.mxu0 0.0
        %539 = vmatpush.msra.mxu0 0.0
        %540 = vmatpush.msra.mxu0 0.0
        %541 = vmatpush.msra.mxu0 0.0
        %542 = vmatpush.msra.mxu0 0.0
        %543 = vmatpush.msra.mxu0 0.0
        %544 = vmatpush.msra.mxu0 0.0
        %545 = vmatpush.msra.mxu0 0.0
        %546 = vmatpush.msra.mxu0 0.0
        %547 = vmatpush.msra.mxu0 0.0
        %548 = vmatpush.msra.mxu0 0.0
        %549 = vmatpush.msra.mxu0 0.0
        %550 = vmatpush.msra.mxu0 0.0
        %551 = vmatpush.msra.mxu0 0.0
        %552 = vmatpush.msra.mxu0 %v498
        %553 = vmatmul.f32.gmra.mxu0 %v509
        %v554 = vpop.f32.mrf.mxu0
        %v555 = vadd.f32 0.0, %v554
        %556 = vmatmul.f32.gmra.mxu0 %v512
        %v557 = vpop.f32.mrf.mxu0
        %v558 = vadd.f32 0.0, %v557
        %559 = vdwg.mxu0
        %560 = vmatpush.msra.mxu0 0.0
        %561 = vmatpush.msra.mxu0 0.0
        %562 = vmatpush.msra.mxu0 0.0
        %563 = vmatpush.msra.mxu0 0.0
        %564 = vmatpush.msra.mxu0 0.0
        %565 = vmatpush.msra.mxu0 0.0
        %566 = vmatpush.msra.mxu0 0.0
        %567 = vmatpush.msra.mxu0 0.0
        %568 = vmatpush.msra.mxu0 0.0
        %569 = vmatpush.msra.mxu0 0.0
        %570 = vmatpush.msra.mxu0 0.0
        %571 = vmatpush.msra.mxu0 0.0
        %572 = vmatpush.msra.mxu0 0.0
        %573 = vmatpush.msra.mxu0 0.0
        %574 = vmatpush.msra.mxu0 0.0
        %575 = vmatpush.msra.mxu0 %v501
        %576 = vmatmul.f32.gmra.mxu0 %v509
        %v577 = vpop.f32.mrf.mxu0
        %v578 = vadd.f32 0.0, %v577
        %579 = vmatmul.f32.gmra.mxu0 %v512
        %v580 = vpop.f32.mrf.mxu0
        %v581 = vadd.f32 0.0, %v580
        %582 = vdwg.mxu0
        %583 = vmatpush.msra.mxu0 0.0
        %584 = vmatpush.msra.mxu0 0.0
        %585 = vmatpush.msra.mxu0 0.0
        %586 = vmatpush.msra.mxu0 0.0
        %587 = vmatpush.msra.mxu0 0.0
        %588 = vmatpush.msra.mxu0 0.0
        %589 = vmatpush.msra.mxu0 0.0
        %590 = vmatpush.msra.mxu0 0.0
        %591 = vmatpush.msra.mxu0 0.0
        %592 = vmatpush.msra.mxu0 0.0
        %593 = vmatpush.msra.mxu0 0.0
        %594 = vmatpush.msra.mxu0 0.0
        %595 = vmatpush.msra.mxu0 0.0
        %596 = vmatpush.msra.mxu0 0.0
        %597 = vmatpush.msra.mxu0 0.0
        %598 = vmatpush.msra.mxu0 %v504
        %599 = vmatmul.f32.gmra.mxu0 %v509
        %v600 = vpop.f32.mrf.mxu0
        %v601 = vadd.f32 0.0, %v600
        %602 = vmatmul.f32.gmra.mxu0 %v512
        %v603 = vpop.f32.mrf.mxu0
        %v604 = vadd.f32 0.0, %v603
        %605 = vdwg.mxu0
        %v610 = vrot.slane %v555, 7
        %vm611 = vcmask 1041409
        %v612 = vsel %vm611, %v610, %v532
        %v613 = vrot.slane %v578, 6
        %vm614 = vcmask 1042434
        %v615 = vsel %vm614, %v613, %v612
        %v616 = vrot.slane %v601, 5
        %vm617 = vcmask 1043459
        %v618 = vsel %vm617, %v616, %v615
        %v620 = vrot.slane %v532, 1
        %v621 = vsel %vm611, %v555, %v620
        %v622 = vrot.slane %v578, 7
        %v623 = vsel %vm614, %v622, %v621
        %v624 = vrot.slane %v601, 6
        %v625 = vsel %vm617, %v624, %v623
        %626 = vrot.lane.b32.xlu0 %v625, 16
        %v627 = vpop.permute.xlu0 %626
        %v629 = vrot.slane %v532, 2
        %v630 = vrot.slane %v555, 1
        %v631 = vsel %vm611, %v630, %v629
        %v632 = vsel %vm614, %v578, %v631
        %v633 = vrot.slane %v601, 7
        %v634 = vsel %vm617, %v633, %v632
        %635 = vrot.lane.b32.xlu0 %v634, 32
        %v636 = vpop.permute.xlu0 %635
        %v638 = vrot.slane %v532, 3
        %v639 = vrot.slane %v555, 2
        %v640 = vsel %vm611, %v639, %v638
        %v641 = vrot.slane %v578, 1
        %v642 = vsel %vm614, %v641, %v640
        %v643 = vsel %vm617, %v601, %v642
        %644 = vrot.lane.b32.xlu0 %v643, 48
        %v645 = vpop.permute.xlu0 %644
        %v647 = vrot.slane %v532, 4
        %v648 = vrot.slane %v555, 3
        %v649 = vsel %vm611, %v648, %v647
        %v650 = vrot.slane %v578, 2
        %v651 = vsel %vm614, %v650, %v649
        %v652 = vrot.slane %v601, 1
        %v653 = vsel %vm617, %v652, %v651
        %654 = vrot.lane.b32.xlu0 %v653, 64
        %v655 = vpop.permute.xlu0 %654
        %v657 = vrot.slane %v532, 5
        %v658 = vrot.slane %v555, 4
        %v659 = vsel %vm611, %v658, %v657
        %v660 = vrot.slane %v578, 3
        %v661 = vsel %vm614, %v660, %v659
        %v662 = vrot.slane %v601, 2
        %v663 = vsel %vm617, %v662, %v661
        %664 = vrot.lane.b32.xlu0 %v663, 80
        %v665 = vpop.permute.xlu0 %664
        %v667 = vrot.slane %v532, 6
        %v668 = vrot.slane %v555, 5
        %v669 = vsel %vm611, %v668, %v667
        %v670 = vrot.slane %v578, 4
        %v671 = vsel %vm614, %v670, %v669
        %v672 = vrot.slane %v601, 3
        %v673 = vsel %vm617, %v672, %v671
        %674 = vrot.lane.b32.xlu0 %v673, 96
        %v675 = vpop.permute.xlu0 %674
        %v677 = vrot.slane %v532, 7
        %v678 = vrot.slane %v555, 6
        %v679 = vsel %vm611, %v678, %v677
        %v680 = vrot.slane %v578, 5
        %v681 = vsel %vm614, %v680, %v679
        %v682 = vrot.slane %v601, 4
        %v683 = vsel %vm617, %v682, %v681
        %684 = vrot.lane.b32.xlu0 %v683, 112
        %v685 = vpop.permute.xlu0 %684
        %v691 = vrot.slane %v558, 7
        %v692 = vsel %vm611, %v691, %v535
        %v693 = vrot.slane %v581, 6
        %v694 = vsel %vm614, %v693, %v692
        %v695 = vrot.slane %v604, 5
        %v696 = vsel %vm617, %v695, %v694
        %v698 = vrot.slane %v535, 1
        %v699 = vsel %vm611, %v558, %v698
        %v700 = vrot.slane %v581, 7
        %v701 = vsel %vm614, %v700, %v699
        %v702 = vrot.slane %v604, 6
        %v703 = vsel %vm617, %v702, %v701
        %704 = vrot.lane.b32.xlu0 %v703, 16
        %v705 = vpop.permute.xlu0 %704
        %v707 = vrot.slane %v535, 2
        %v708 = vrot.slane %v558, 1
        %v709 = vsel %vm611, %v708, %v707
        %v710 = vsel %vm614, %v581, %v709
        %v711 = vrot.slane %v604, 7
        %v712 = vsel %vm617, %v711, %v710
        %713 = vrot.lane.b32.xlu0 %v712, 32
        %v714 = vpop.permute.xlu0 %713
        %v716 = vrot.slane %v535, 3
        %v717 = vrot.slane %v558, 2
        %v718 = vsel %vm611, %v717, %v716
        %v719 = vrot.slane %v581, 1
        %v720 = vsel %vm614, %v719, %v718
        %v721 = vsel %vm617, %v604, %v720
        %722 = vrot.lane.b32.xlu0 %v721, 48
        %v723 = vpop.permute.xlu0 %722
        %v725 = vrot.slane %v535, 4
        %v726 = vrot.slane %v558, 3
        %v727 = vsel %vm611, %v726, %v725
        %v728 = vrot.slane %v581, 2
        %v729 = vsel %vm614, %v728, %v727
        %v730 = vrot.slane %v604, 1
        %v731 = vsel %vm617, %v730, %v729
        %732 = vrot.lane.b32.xlu0 %v731, 64
        %v733 = vpop.permute.xlu0 %732
        %v735 = vrot.slane %v535, 5
        %v736 = vrot.slane %v558, 4
        %v737 = vsel %vm611, %v736, %v735
        %v738 = vrot.slane %v581, 3
        %v739 = vsel %vm614, %v738, %v737
        %v740 = vrot.slane %v604, 2
        %v741 = vsel %vm617, %v740, %v739
        %742 = vrot.lane.b32.xlu0 %v741, 80
        %v743 = vpop.permute.xlu0 %742
        %v745 = vrot.slane %v535, 6
        %v746 = vrot.slane %v558, 5
        %v747 = vsel %vm611, %v746, %v745
        %v748 = vrot.slane %v581, 4
        %v749 = vsel %vm614, %v748, %v747
        %v750 = vrot.slane %v604, 3
        %v751 = vsel %vm617, %v750, %v749
        %752 = vrot.lane.b32.xlu0 %v751, 96
        %v753 = vpop.permute.xlu0 %752
        %v755 = vrot.slane %v535, 7
        %v756 = vrot.slane %v558, 6
        %v757 = vsel %vm611, %v756, %v755
        %v758 = vrot.slane %v581, 5
        %v759 = vsel %vm614, %v758, %v757
        %v760 = vrot.slane %v604, 4
        %v761 = vsel %vm617, %v760, %v759
        %762 = vrot.lane.b32.xlu0 %v761, 112
        %v763 = vpop.permute.xlu0 %762
        %vm765 = vcmask 130048
        %v766 = vsel %vm765, %v618, %v627
        %vm767 = vcmask 261120
        %v768 = vsel %vm767, %v766, %v636
        %vm769 = vcmask 392192
        %v770 = vsel %vm769, %v768, %v645
        %vm771 = vcmask 523264
        %v772 = vsel %vm771, %v770, %v655
        %vm773 = vcmask 654336
        %v774 = vsel %vm773, %v772, %v665
        %vm775 = vcmask 785408
        %v776 = vsel %vm775, %v774, %v675
        %vm777 = vcmask 916480
        %v778 = vsel %vm777, %v776, %v685
        %v779 = vsel %vm765, %v696, %v705
        %v780 = vsel %vm767, %v779, %v714
        %v781 = vsel %vm769, %v780, %v723
        %v782 = vsel %vm771, %v781, %v733
        %v783 = vsel %vm773, %v782, %v743
        %v784 = vsel %vm775, %v783, %v753
        %v785 = vsel %vm777, %v784, %v763
        %v786 = vld [vmem:[%s458] sm:$0xff]
        %s788 = scalar_lea.vmem [#allocation1], 1
        %789 = vst [vmem:[%s788] ss:$2 sm:$0xff] %v786
        %v790 = vld.sshfl [vmem:[#allocation1] sm:$0xff pattern:$0x75316420]
        %v791 = vld.sshfl [vmem:[#allocation1 + $0x8] sm:$0xff pattern:$0x75316420]
        %vm794 = vcmask 1043456
        %v795 = vsel %vm794, %v778, %v790
        %v796 = vsel %vm794, %v785, %v791
        %v797 = vld [vmem:[%s5] sm:$0xf]
        %v799 = vsel %vm464, %v797, 0
        %801 = vmatpush.msra.mxu0 0.0
        %802 = vmatpush.msra.mxu0 0.0
        %803 = vmatpush.msra.mxu0 0.0
        %804 = vmatpush.msra.mxu0 0.0
        %805 = vmatpush.msra.mxu0 0.0
        %806 = vmatpush.msra.mxu0 0.0
        %807 = vmatpush.msra.mxu0 0.0
        %808 = vmatpush.msra.mxu0 0.0
        %809 = vmatpush.msra.mxu0 0.0
        %810 = vmatpush.msra.mxu0 0.0
        %811 = vmatpush.msra.mxu0 0.0
        %812 = vmatpush.msra.mxu0 0.0
        %813 = vmatpush.msra.mxu0 0.0
        %814 = vmatpush.msra.mxu0 0.0
        %815 = vmatpush.msra.mxu0 0.0
        %816 = vmatpush.msra.mxu0 %v795
        %817 = vmatmul.f32.gmra.mxu0 %v799
        %v818 = vpop.f32.mrf.mxu0
        %v819 = vadd.f32 0.0, %v818
        %820 = vdwg.mxu0
        %821 = vmatpush.msra.mxu0 0.0
        %822 = vmatpush.msra.mxu0 0.0
        %823 = vmatpush.msra.mxu0 0.0
        %824 = vmatpush.msra.mxu0 0.0
        %825 = vmatpush.msra.mxu0 0.0
        %826 = vmatpush.msra.mxu0 0.0
        %827 = vmatpush.msra.mxu0 0.0
        %828 = vmatpush.msra.mxu0 0.0
        %829 = vmatpush.msra.mxu0 0.0
        %830 = vmatpush.msra.mxu0 0.0
        %831 = vmatpush.msra.mxu0 0.0
        %832 = vmatpush.msra.mxu0 0.0
        %833 = vmatpush.msra.mxu0 0.0
        %834 = vmatpush.msra.mxu0 0.0
        %835 = vmatpush.msra.mxu0 0.0
        %836 = vmatpush.msra.mxu0 %v796
        %837 = vmatmul.f32.gmra.mxu0 %v799
        %v838 = vpop.f32.mrf.mxu0
        %v839 = vadd.f32 0.0, %v838
        %840 = vdwg.mxu0
        %v841 = vsel %vm794, %v819, 0.0
        %v842 = vsel %vm794, %v839, 0.0
        %v843 = vadd.f32 %v841, %v842
        %844 = vadd.xlane.f32.xlu0 %v843
        %v845 = vpop.xlane.xlu0 %844
        %v846 = vmul.f32 %v845, 0.00390625
        %v847 = vld [vmem:[%s6] sm:$0xf]
        %v848 = vadd.f32 %v846, %v847
        %vm849 = vcmask 3072
        %v850 = vsel %vm849, %v848, -inf
        %v851 = vrot.slane %v850, 4
        %v852 = vmax.f32 %v850, %v851
        %v853 = vrot.slane %v852, 2
        %v854 = vmax.f32 %v852, %v853
        %v855 = vrot.slane %v854, 1
        %v856 = vmax.f32 %v854, %v855
        %v857 = vsub.f32 %v848, %v856
        %v858 = vmul.f32 %v857, 1.442695
        %v859 = vpow.pop %v858
        %v860 = vsel %vm849, %v859, 0.0
        %v861 = vrot.slane %v860, 4
        %v862 = vadd.f32 %v860, %v861
        %v863 = vrot.slane %v862, 2
        %v864 = vadd.f32 %v862, %v863
        %v865 = vrot.slane %v864, 1
        %v866 = vadd.f32 %v864, %v865
        %v867 = vrcp.pop %v866
        %v868 = vmul.f32 %v859, %v867
        %v869 = vld [vmem:[%s4] sm:$0xff]
        %v870 = vld [vmem:[%s4 + $0x8] sm:$0xff]
        %v871 = vld [vmem:[%s4 + $0x10] sm:$0x1]
        %v872 = vld [vmem:[%s4 + $0x18] sm:$0x1]
        %873 = vrot.lane.b32.xlu0 %v795, 17
        %v874 = vpop.permute.xlu0 %873
        %875 = vrot.lane.b32.xlu0 %v796, 17
        %v876 = vpop.permute.xlu0 %875
        %v877 = vlaneseq
        %v878 = vand.u32 %v877, 127
        %vm879 = vcmp.lt.s32.totalorder %v878, 17
        %v880 = vsel %vm879, %v874, %v876
        %v881 = vsel %vm879, %v876, %v874
        %v882 = vperm.slane %v869, 0
        %v883 = vperm.slane %v870, 0
        %v884 = vmul.f32 %v881, %v882
        %v885 = vmul.f32 %v880, %v883
        %886 = vrot.lane.b32.xlu0 %v795, 16
        %v887 = vpop.permute.xlu0 %886
        %888 = vrot.lane.b32.xlu0 %v796, 16
        %v889 = vpop.permute.xlu0 %888
        %vm890 = vcmp.lt.s32.totalorder %v878, 16
        %v891 = vsel %vm890, %v887, %v889
        %v892 = vsel %vm890, %v889, %v887
        %v893 = vperm.slane %v869, 1
        %v894 = vperm.slane %v870, 1
        %v895 = vmul.f32 %v892, %v893
        %v896 = vmul.f32 %v891, %v894
        %897 = vrot.lane.b32.xlu0 %v795, 15
        %v898 = vpop.permute.xlu0 %897
        %899 = vrot.lane.b32.xlu0 %v796, 15
        %v900 = vpop.permute.xlu0 %899
        %vm901 = vcmp.lt.s32.totalorder %v878, 15
        %v902 = vsel %vm901, %v898, %v900
        %v903 = vsel %vm901, %v900, %v898
        %v904 = vperm.slane %v869, 2
        %v905 = vperm.slane %v870, 2
        %v906 = vmul.f32 %v903, %v904
        %v907 = vmul.f32 %v902, %v905
        %908 = vrot.lane.b32.xlu0 %v795, 1
        %v909 = vpop.permute.xlu0 %908
        %910 = vrot.lane.b32.xlu0 %v796, 1
        %v911 = vpop.permute.xlu0 %910
        %vm912 = vcmp.lt.s32.totalorder %v878, 1
        %v913 = vsel %vm912, %v909, %v911
        %v914 = vsel %vm912, %v911, %v909
        %v915 = vperm.slane %v869, 3
        %v916 = vperm.slane %v870, 3
        %v917 = vmul.f32 %v914, %v915
        %v918 = vmul.f32 %v913, %v916
        %919 = vrot.lane.b32.xlu0 %v795, 127
        %v920 = vpop.permute.xlu0 %919
        %921 = vrot.lane.b32.xlu0 %v796, 127
        %v922 = vpop.permute.xlu0 %921
        %vm923 = vcmp.lt.s32.totalorder %v878, 127
        %v924 = vsel %vm923, %v920, %v922
        %v925 = vsel %vm923, %v922, %v920
        %v926 = vperm.slane %v869, 5
        %v927 = vperm.slane %v870, 5
        %v928 = vmul.f32 %v924, %v926
        %v929 = vmul.f32 %v925, %v927
        %930 = vrot.lane.b32.xlu0 %v795, 113
        %v931 = vpop.permute.xlu0 %930
        %932 = vrot.lane.b32.xlu0 %v796, 113
        %v933 = vpop.permute.xlu0 %932
        %vm934 = vcmp.lt.s32.totalorder %v878, 113
        %v935 = vsel %vm934, %v931, %v933
        %v936 = vsel %vm934, %v933, %v931
        %v937 = vperm.slane %v869, 6
        %v938 = vperm.slane %v870, 6
        %v939 = vmul.f32 %v935, %v937
        %v940 = vmul.f32 %v936, %v938
        %941 = vrot.lane.b32.xlu0 %v795, 112
        %v942 = vpop.permute.xlu0 %941
        %943 = vrot.lane.b32.xlu0 %v796, 112
        %v944 = vpop.permute.xlu0 %943
        %vm945 = vcmp.lt.s32.totalorder %v878, 112
        %v946 = vsel %vm945, %v942, %v944
        %v947 = vsel %vm945, %v944, %v942
        %v948 = vperm.slane %v869, 7
        %v949 = vperm.slane %v870, 7
        %v950 = vmul.f32 %v946, %v948
        %v951 = vmul.f32 %v947, %v949
        %952 = vrot.lane.b32.xlu0 %v795, 111
        %v953 = vpop.permute.xlu0 %952
        %954 = vrot.lane.b32.xlu0 %v796, 111
        %v955 = vpop.permute.xlu0 %954
        %vm956 = vcmp.lt.s32.totalorder %v878, 111
        %v957 = vsel %vm956, %v953, %v955
        %v958 = vsel %vm956, %v955, %v953
        %v959 = vperm.slane %v871, 0
        %v960 = vperm.slane %v872, 0
        %v961 = vmul.f32 %v957, %v959
        %v962 = vmul.f32 %v958, %v960
        %v963 = vld [vmem:[%s7] sm:$0xff]
        %v964 = vld [vmem:[%s7 + $0x8] sm:$0xff]
        %v965 = vld [vmem:[%s7 + $0x10] sm:$0xff]
        %v966 = vld [vmem:[%s7 + $0x18] sm:$0xff]
        %vm967 = vcmask 588800
        %v969 = vsel %vm967, %v963, 0
        %v972 = vsel %vm967, %v964, 0
        %v975 = vsel %vm967, %v965, 0
        %v978 = vsel %vm967, %v966, 0
        %980 = vmatpush.msra.mxu0 0.0
        %981 = vmatpush.msra.mxu0 0.0
        %982 = vmatpush.msra.mxu0 0.0
        %983 = vmatpush.msra.mxu0 0.0
        %984 = vmatpush.msra.mxu0 0.0
        %985 = vmatpush.msra.mxu0 0.0
        %986 = vmatpush.msra.mxu0 0.0
        %987 = vmatpush.msra.mxu0 %v961
        %988 = vmatpush.msra.mxu0 %v950
        %989 = vmatpush.msra.mxu0 %v939
        %990 = vmatpush.msra.mxu0 %v928
        %991 = vmatpush.msra.mxu0 %v795
        %992 = vmatpush.msra.mxu0 %v917
        %993 = vmatpush.msra.mxu0 %v906
        %994 = vmatpush.msra.mxu0 %v895
        %995 = vmatpush.msra.mxu0 %v884
        %996 = vmatmul.f32.gmra.mxu0 %v969
        %v997 = vpop.f32.mrf.mxu0
        %v998 = vadd.f32 0.0, %v997
        %999 = vmatmul.f32.gmra.mxu0 %v972
        %v1000 = vpop.f32.mrf.mxu0
        %v1001 = vadd.f32 0.0, %v1000
        %1002 = vmatmul.f32.gmra.mxu0 %v975
        %v1003 = vpop.f32.mrf.mxu0
        %v1004 = vadd.f32 0.0, %v1003
        %1005 = vmatmul.f32.gmra.mxu0 %v978
        %v1006 = vpop.f32.mrf.mxu0
        %v1007 = vadd.f32 0.0, %v1006
        %1008 = vdwg.mxu0
        %1009 = vmatpush.msra.mxu0 0.0
        %1010 = vmatpush.msra.mxu0 0.0
        %1011 = vmatpush.msra.mxu0 0.0
        %1012 = vmatpush.msra.mxu0 0.0
        %1013 = vmatpush.msra.mxu0 0.0
        %1014 = vmatpush.msra.mxu0 0.0
        %1015 = vmatpush.msra.mxu0 0.0
        %1016 = vmatpush.msra.mxu0 %v962
        %1017 = vmatpush.msra.mxu0 %v951
        %1018 = vmatpush.msra.mxu0 %v940
        %1019 = vmatpush.msra.mxu0 %v929
        %1020 = vmatpush.msra.mxu0 %v796
        %1021 = vmatpush.msra.mxu0 %v918
        %1022 = vmatpush.msra.mxu0 %v907
        %1023 = vmatpush.msra.mxu0 %v896
        %1024 = vmatpush.msra.mxu0 %v885
        %1025 = vmatmul.f32.gmra.mxu0 %v969
        %v1026 = vpop.f32.mrf.mxu0
        %v1027 = vadd.f32 0.0, %v1026
        %1028 = vmatmul.f32.gmra.mxu0 %v972
        %v1029 = vpop.f32.mrf.mxu0
        %v1030 = vadd.f32 0.0, %v1029
        %1031 = vmatmul.f32.gmra.mxu0 %v975
        %v1032 = vpop.f32.mrf.mxu0
        %v1033 = vadd.f32 0.0, %v1032
        %1034 = vmatmul.f32.gmra.mxu0 %v978
        %v1035 = vpop.f32.mrf.mxu0
        %v1036 = vadd.f32 0.0, %v1035
        %1037 = vdwg.mxu0
        %v1038 = vld [vmem:[%s8] sm:$0xff]
        %v1039 = vld [vmem:[%s8 + $0x8] sm:$0xff]
        %v1040 = vld [vmem:[%s8 + $0x10] sm:$0xff]
        %v1041 = vld [vmem:[%s8 + $0x18] sm:$0xff]
        %1043 = vset.pattern.permute.xlu0 0
        %1044 = vperm.xlu0 %1043, %v1038
        %v1045 = vpop.permute.xlu0 %1044
        %1048 = vset.pattern.permute.xlu0 0
        %1049 = vperm.xlu0 %1048, %v1039
        %v1050 = vpop.permute.xlu0 %1049
        %1053 = vset.pattern.permute.xlu0 0
        %1054 = vperm.xlu0 %1053, %v1040
        %v1055 = vpop.permute.xlu0 %1054
        %1058 = vset.pattern.permute.xlu0 0
        %1059 = vperm.xlu0 %1058, %v1041
        %v1060 = vpop.permute.xlu0 %1059
        %v1062 = vmul.f32 %v998, %v1045
        %v1063 = vmul.f32 %v1027, %v1045
        %v1064 = vmul.f32 %v1001, %v1050
        %v1065 = vmul.f32 %v1030, %v1050
        %v1066 = vmul.f32 %v1004, %v1055
        %v1067 = vmul.f32 %v1033, %v1055
        %v1068 = vmul.f32 %v1007, %v1060
        %v1069 = vmul.f32 %v1036, %v1060
        %v1070 = vld [vmem:[%s9] sm:$0xff]
        %v1071 = vld [vmem:[%s9 + $0x8] sm:$0xff]
        %v1072 = vld [vmem:[%s9 + $0x10] sm:$0xff]
        %v1073 = vld [vmem:[%s9 + $0x18] sm:$0xff]
        %1075 = vset.pattern.permute.xlu0 0
        %1076 = vperm.xlu0 %1075, %v1070
        %v1077 = vpop.permute.xlu0 %1076
        %1080 = vset.pattern.permute.xlu0 0
        %1081 = vperm.xlu0 %1080, %v1071
        %v1082 = vpop.permute.xlu0 %1081
        %1085 = vset.pattern.permute.xlu0 0
        %1086 = vperm.xlu0 %1085, %v1072
        %v1087 = vpop.permute.xlu0 %1086
        %1090 = vset.pattern.permute.xlu0 0
        %1091 = vperm.xlu0 %1090, %v1073
        %v1092 = vpop.permute.xlu0 %1091
        %v1094 = vadd.f32 %v1062, %v1077
        %v1095 = vadd.f32 %v1063, %v1077
        %v1096 = vadd.f32 %v1064, %v1082
        %v1097 = vadd.f32 %v1065, %v1082
        %v1098 = vadd.f32 %v1066, %v1087
        %v1099 = vadd.f32 %v1067, %v1087
        %v1100 = vadd.f32 %v1068, %v1092
        %v1101 = vadd.f32 %v1069, %v1092
        %v1102 = vmax.f32 %v1094, 0.0
        %v1103 = vmax.f32 %v1095, 0.0
        %v1104 = vmax.f32 %v1096, 0.0
        %v1105 = vmax.f32 %v1097, 0.0
        %v1106 = vmax.f32 %v1098, 0.0
        %v1107 = vmax.f32 %v1099, 0.0
        %v1108 = vmax.f32 %v1100, 0.0
        %v1109 = vmax.f32 %v1101, 0.0
        %1110 = vrot.lane.b32.xlu0 %v1102, 17
        %v1111 = vpop.permute.xlu0 %1110
        %1112 = vrot.lane.b32.xlu0 %v1104, 17
        %v1113 = vpop.permute.xlu0 %1112
        %1114 = vrot.lane.b32.xlu0 %v1106, 17
        %v1115 = vpop.permute.xlu0 %1114
        %1116 = vrot.lane.b32.xlu0 %v1108, 17
        %v1117 = vpop.permute.xlu0 %1116
        %1118 = vrot.lane.b32.xlu0 %v1103, 17
        %v1119 = vpop.permute.xlu0 %1118
        %1120 = vrot.lane.b32.xlu0 %v1105, 17
        %v1121 = vpop.permute.xlu0 %1120
        %1122 = vrot.lane.b32.xlu0 %v1107, 17
        %v1123 = vpop.permute.xlu0 %1122
        %1124 = vrot.lane.b32.xlu0 %v1109, 17
        %v1125 = vpop.permute.xlu0 %1124
        %v1126 = vsel %vm879, %v1111, %v1119
        %v1127 = vsel %vm879, %v1113, %v1121
        %v1128 = vsel %vm879, %v1115, %v1123
        %v1129 = vsel %vm879, %v1117, %v1125
        %v1130 = vsel %vm879, %v1119, %v1111
        %v1131 = vsel %vm879, %v1121, %v1113
        %v1132 = vsel %vm879, %v1123, %v1115
        %v1133 = vsel %vm879, %v1125, %v1117
        %v1134 = vmul.f32 %v1130, %v882
        %v1135 = vmul.f32 %v1126, %v883
        %v1136 = vmul.f32 %v1131, %v882
        %v1137 = vmul.f32 %v1127, %v883
        %v1138 = vmul.f32 %v1132, %v882
        %v1139 = vmul.f32 %v1128, %v883
        %v1140 = vmul.f32 %v1133, %v882
        %v1141 = vmul.f32 %v1129, %v883
        %1142 = vrot.lane.b32.xlu0 %v1102, 16
        %v1143 = vpop.permute.xlu0 %1142
        %1144 = vrot.lane.b32.xlu0 %v1104, 16
        %v1145 = vpop.permute.xlu0 %1144
        %1146 = vrot.lane.b32.xlu0 %v1106, 16
        %v1147 = vpop.permute.xlu0 %1146
        %1148 = vrot.lane.b32.xlu0 %v1108, 16
        %v1149 = vpop.permute.xlu0 %1148
        %1150 = vrot.lane.b32.xlu0 %v1103, 16
        %v1151 = vpop.permute.xlu0 %1150
        %1152 = vrot.lane.b32.xlu0 %v1105, 16
        %v1153 = vpop.permute.xlu0 %1152
        %1154 = vrot.lane.b32.xlu0 %v1107, 16
        %v1155 = vpop.permute.xlu0 %1154
        %1156 = vrot.lane.b32.xlu0 %v1109, 16
        %v1157 = vpop.permute.xlu0 %1156
        %v1158 = vsel %vm890, %v1143, %v1151
        %v1159 = vsel %vm890, %v1145, %v1153
        %v1160 = vsel %vm890, %v1147, %v1155
        %v1161 = vsel %vm890, %v1149, %v1157
        %v1162 = vsel %vm890, %v1151, %v1143
        %v1163 = vsel %vm890, %v1153, %v1145
        %v1164 = vsel %vm890, %v1155, %v1147
        %v1165 = vsel %vm890, %v1157, %v1149
        %v1166 = vmul.f32 %v1162, %v893
        %v1167 = vmul.f32 %v1158, %v894
        %v1168 = vmul.f32 %v1163, %v893
        %v1169 = vmul.f32 %v1159, %v894
        %v1170 = vmul.f32 %v1164, %v893
        %v1171 = vmul.f32 %v1160, %v894
        %v1172 = vmul.f32 %v1165, %v893
        %v1173 = vmul.f32 %v1161, %v894
        %1174 = vrot.lane.b32.xlu0 %v1102, 15
        %v1175 = vpop.permute.xlu0 %1174
        %1176 = vrot.lane.b32.xlu0 %v1104, 15
        %v1177 = vpop.permute.xlu0 %1176
        %1178 = vrot.lane.b32.xlu0 %v1106, 15
        %v1179 = vpop.permute.xlu0 %1178
        %1180 = vrot.lane.b32.xlu0 %v1108, 15
        %v1181 = vpop.permute.xlu0 %1180
        %1182 = vrot.lane.b32.xlu0 %v1103, 15
        %v1183 = vpop.permute.xlu0 %1182
        %1184 = vrot.lane.b32.xlu0 %v1105, 15
        %v1185 = vpop.permute.xlu0 %1184
        %1186 = vrot.lane.b32.xlu0 %v1107, 15
        %v1187 = vpop.permute.xlu0 %1186
        %1188 = vrot.lane.b32.xlu0 %v1109, 15
        %v1189 = vpop.permute.xlu0 %1188
        %v1190 = vsel %vm901, %v1175, %v1183
        %v1191 = vsel %vm901, %v1177, %v1185
        %v1192 = vsel %vm901, %v1179, %v1187
        %v1193 = vsel %vm901, %v1181, %v1189
        %v1194 = vsel %vm901, %v1183, %v1175
        %v1195 = vsel %vm901, %v1185, %v1177
        %v1196 = vsel %vm901, %v1187, %v1179
        %v1197 = vsel %vm901, %v1189, %v1181
        %v1198 = vmul.f32 %v1194, %v904
        %v1199 = vmul.f32 %v1190, %v905
        %v1200 = vmul.f32 %v1195, %v904
        %v1201 = vmul.f32 %v1191, %v905
        %v1202 = vmul.f32 %v1196, %v904
        %v1203 = vmul.f32 %v1192, %v905
        %v1204 = vmul.f32 %v1197, %v904
        %v1205 = vmul.f32 %v1193, %v905
        %1206 = vrot.lane.b32.xlu0 %v1102, 1
        %v1207 = vpop.permute.xlu0 %1206
        %1208 = vrot.lane.b32.xlu0 %v1104, 1
        %v1209 = vpop.permute.xlu0 %1208
        %1210 = vrot.lane.b32.xlu0 %v1106, 1
        %v1211 = vpop.permute.xlu0 %1210
        %1212 = vrot.lane.b32.xlu0 %v1108, 1
        %v1213 = vpop.permute.xlu0 %1212
        %1214 = vrot.lane.b32.xlu0 %v1103, 1
        %v1215 = vpop.permute.xlu0 %1214
        %1216 = vrot.lane.b32.xlu0 %v1105, 1
        %v1217 = vpop.permute.xlu0 %1216
        %1218 = vrot.lane.b32.xlu0 %v1107, 1
        %v1219 = vpop.permute.xlu0 %1218
        %1220 = vrot.lane.b32.xlu0 %v1109, 1
        %v1221 = vpop.permute.xlu0 %1220
        %v1222 = vsel %vm912, %v1207, %v1215
        %v1223 = vsel %vm912, %v1209, %v1217
        %v1224 = vsel %vm912, %v1211, %v1219
        %v1225 = vsel %vm912, %v1213, %v1221
        %v1226 = vsel %vm912, %v1215, %v1207
        %v1227 = vsel %vm912, %v1217, %v1209
        %v1228 = vsel %vm912, %v1219, %v1211
        %v1229 = vsel %vm912, %v1221, %v1213
        %v1230 = vmul.f32 %v1226, %v915
        %v1231 = vmul.f32 %v1222, %v916
        %v1232 = vmul.f32 %v1227, %v915
        %v1233 = vmul.f32 %v1223, %v916
        %v1234 = vmul.f32 %v1228, %v915
        %v1235 = vmul.f32 %v1224, %v916
        %v1236 = vmul.f32 %v1229, %v915
        %v1237 = vmul.f32 %v1225, %v916
        %1238 = vrot.lane.b32.xlu0 %v1102, 127
        %v1239 = vpop.permute.xlu0 %1238
        %1240 = vrot.lane.b32.xlu0 %v1104, 127
        %v1241 = vpop.permute.xlu0 %1240
        %1242 = vrot.lane.b32.xlu0 %v1106, 127
        %v1243 = vpop.permute.xlu0 %1242
        %1244 = vrot.lane.b32.xlu0 %v1108, 127
        %v1245 = vpop.permute.xlu0 %1244
        %1246 = vrot.lane.b32.xlu0 %v1103, 127
        %v1247 = vpop.permute.xlu0 %1246
        %1248 = vrot.lane.b32.xlu0 %v1105, 127
        %v1249 = vpop.permute.xlu0 %1248
        %1250 = vrot.lane.b32.xlu0 %v1107, 127
        %v1251 = vpop.permute.xlu0 %1250
        %1252 = vrot.lane.b32.xlu0 %v1109, 127
        %v1253 = vpop.permute.xlu0 %1252
        %v1254 = vsel %vm923, %v1239, %v1247
        %v1255 = vsel %vm923, %v1241, %v1249
        %v1256 = vsel %vm923, %v1243, %v1251
        %v1257 = vsel %vm923, %v1245, %v1253
        %v1258 = vsel %vm923, %v1247, %v1239
        %v1259 = vsel %vm923, %v1249, %v1241
        %v1260 = vsel %vm923, %v1251, %v1243
        %v1261 = vsel %vm923, %v1253, %v1245
        %v1262 = vmul.f32 %v1254, %v926
        %v1263 = vmul.f32 %v1258, %v927
        %v1264 = vmul.f32 %v1255, %v926
        %v1265 = vmul.f32 %v1259, %v927
        %v1266 = vmul.f32 %v1256, %v926
        %v1267 = vmul.f32 %v1260, %v927
        %v1268 = vmul.f32 %v1257, %v926
        %v1269 = vmul.f32 %v1261, %v927
        %1270 = vrot.lane.b32.xlu0 %v1102, 113
        %v1271 = vpop.permute.xlu0 %1270
        %1272 = vrot.lane.b32.xlu0 %v1104, 113
        %v1273 = vpop.permute.xlu0 %1272
        %1274 = vrot.lane.b32.xlu0 %v1106, 113
        %v1275 = vpop.permute.xlu0 %1274
        %1276 = vrot.lane.b32.xlu0 %v1108, 113
        %v1277 = vpop.permute.xlu0 %1276
        %1278 = vrot.lane.b32.xlu0 %v1103, 113
        %v1279 = vpop.permute.xlu0 %1278
        %1280 = vrot.lane.b32.xlu0 %v1105, 113
        %v1281 = vpop.permute.xlu0 %1280
        %1282 = vrot.lane.b32.xlu0 %v1107, 113
        %v1283 = vpop.permute.xlu0 %1282
        %1284 = vrot.lane.b32.xlu0 %v1109, 113
        %v1285 = vpop.permute.xlu0 %1284
        %v1286 = vsel %vm934, %v1271, %v1279
        %v1287 = vsel %vm934, %v1273, %v1281
        %v1288 = vsel %vm934, %v1275, %v1283
        %v1289 = vsel %vm934, %v1277, %v1285
        %v1290 = vsel %vm934, %v1279, %v1271
        %v1291 = vsel %vm934, %v1281, %v1273
        %v1292 = vsel %vm934, %v1283, %v1275
        %v1293 = vsel %vm934, %v1285, %v1277
        %v1294 = vmul.f32 %v1286, %v937
        %v1295 = vmul.f32 %v1290, %v938
        %v1296 = vmul.f32 %v1287, %v937
        %v1297 = vmul.f32 %v1291, %v938
        %v1298 = vmul.f32 %v1288, %v937
        %v1299 = vmul.f32 %v1292, %v938
        %v1300 = vmul.f32 %v1289, %v937
        %v1301 = vmul.f32 %v1293, %v938
        %1302 = vrot.lane.b32.xlu0 %v1102, 112
        %v1303 = vpop.permute.xlu0 %1302
        %1304 = vrot.lane.b32.xlu0 %v1104, 112
        %v1305 = vpop.permute.xlu0 %1304
        %1306 = vrot.lane.b32.xlu0 %v1106, 112
        %v1307 = vpop.permute.xlu0 %1306
        %1308 = vrot.lane.b32.xlu0 %v1108, 112
        %v1309 = vpop.permute.xlu0 %1308
        %1310 = vrot.lane.b32.xlu0 %v1103, 112
        %v1311 = vpop.permute.xlu0 %1310
        %1312 = vrot.lane.b32.xlu0 %v1105, 112
        %v1313 = vpop.permute.xlu0 %1312
        %1314 = vrot.lane.b32.xlu0 %v1107, 112
        %v1315 = vpop.permute.xlu0 %1314
        %1316 = vrot.lane.b32.xlu0 %v1109, 112
        %v1317 = vpop.permute.xlu0 %1316
        %v1318 = vsel %vm945, %v1303, %v1311
        %v1319 = vsel %vm945, %v1305, %v1313
        %v1320 = vsel %vm945, %v1307, %v1315
        %v1321 = vsel %vm945, %v1309, %v1317
        %v1322 = vsel %vm945, %v1311, %v1303
        %v1323 = vsel %vm945, %v1313, %v1305
        %v1324 = vsel %vm945, %v1315, %v1307
        %v1325 = vsel %vm945, %v1317, %v1309
        %v1326 = vmul.f32 %v1318, %v948
        %v1327 = vmul.f32 %v1322, %v949
        %v1328 = vmul.f32 %v1319, %v948
        %v1329 = vmul.f32 %v1323, %v949
        %v1330 = vmul.f32 %v1320, %v948
        %v1331 = vmul.f32 %v1324, %v949
        %v1332 = vmul.f32 %v1321, %v948
        %v1333 = vmul.f32 %v1325, %v949
        %1334 = vrot.lane.b32.xlu0 %v1102, 111
        %v1335 = vpop.permute.xlu0 %1334
        %1336 = vrot.lane.b32.xlu0 %v1104, 111
        %v1337 = vpop.permute.xlu0 %1336
        %1338 = vrot.lane.b32.xlu0 %v1106, 111
        %v1339 = vpop.permute.xlu0 %1338
        %1340 = vrot.lane.b32.xlu0 %v1108, 111
        %v1341 = vpop.permute.xlu0 %1340
        %1342 = vrot.lane.b32.xlu0 %v1103, 111
        %v1343 = vpop.permute.xlu0 %1342
        %1344 = vrot.lane.b32.xlu0 %v1105, 111
        %v1345 = vpop.permute.xlu0 %1344
        %1346 = vrot.lane.b32.xlu0 %v1107, 111
        %v1347 = vpop.permute.xlu0 %1346
        %1348 = vrot.lane.b32.xlu0 %v1109, 111
        %v1349 = vpop.permute.xlu0 %1348
        %v1350 = vsel %vm956, %v1335, %v1343
        %v1351 = vsel %vm956, %v1337, %v1345
        %v1352 = vsel %vm956, %v1339, %v1347
        %v1353 = vsel %vm956, %v1341, %v1349
        %v1354 = vsel %vm956, %v1343, %v1335
        %v1355 = vsel %vm956, %v1345, %v1337
        %v1356 = vsel %vm956, %v1347, %v1339
        %v1357 = vsel %vm956, %v1349, %v1341
        %v1358 = vmul.f32 %v1350, %v959
        %v1359 = vmul.f32 %v1354, %v960
        %v1360 = vmul.f32 %v1351, %v959
        %v1361 = vmul.f32 %v1355, %v960
        %v1362 = vmul.f32 %v1352, %v959
        %v1363 = vmul.f32 %v1356, %v960
        %v1364 = vmul.f32 %v1353, %v959
        %v1365 = vmul.f32 %v1357, %v960
        %v1366 = vld [vmem:[%s10] sm:$0xff]
        %v1368 = vsel %vm967, %v1366, 0
        %1370 = vmatpush.msra.mxu0 0.0
        %1371 = vmatpush.msra.mxu0 0.0
        %1372 = vmatpush.msra.mxu0 0.0
        %1373 = vmatpush.msra.mxu0 0.0
        %1374 = vmatpush.msra.mxu0 0.0
        %1375 = vmatpush.msra.mxu0 0.0
        %1376 = vmatpush.msra.mxu0 0.0
        %1377 = vmatpush.msra.mxu0 %v1358
        %1378 = vmatpush.msra.mxu0 %v1326
        %1379 = vmatpush.msra.mxu0 %v1294
        %1380 = vmatpush.msra.mxu0 %v1262
        %1381 = vmatpush.msra.mxu0 %v1102
        %1382 = vmatpush.msra.mxu0 %v1230
        %1383 = vmatpush.msra.mxu0 %v1198
        %1384 = vmatpush.msra.mxu0 %v1166
        %1385 = vmatpush.msra.mxu0 %v1134
        %1386 = vmatmul.f32.gmra.mxu0 %v1368
        %v1387 = vpop.f32.mrf.mxu0
        %v1388 = vadd.f32 0.0, %v1387
        %1389 = vdwg.mxu0
        %1390 = vmatpush.msra.mxu0 0.0
        %1391 = vmatpush.msra.mxu0 0.0
        %1392 = vmatpush.msra.mxu0 0.0
        %1393 = vmatpush.msra.mxu0 0.0
        %1394 = vmatpush.msra.mxu0 0.0
        %1395 = vmatpush.msra.mxu0 0.0
        %1396 = vmatpush.msra.mxu0 0.0
        %1397 = vmatpush.msra.mxu0 %v1359
        %1398 = vmatpush.msra.mxu0 %v1327
        %1399 = vmatpush.msra.mxu0 %v1295
        %1400 = vmatpush.msra.mxu0 %v1263
        %1401 = vmatpush.msra.mxu0 %v1103
        %1402 = vmatpush.msra.mxu0 %v1231
        %1403 = vmatpush.msra.mxu0 %v1199
        %1404 = vmatpush.msra.mxu0 %v1167
        %1405 = vmatpush.msra.mxu0 %v1135
        %1406 = vmatmul.f32.gmra.mxu0 %v1368
        %v1407 = vpop.f32.mrf.mxu0
        %v1408 = vadd.f32 0.0, %v1407
        %1409 = vdwg.mxu0
        %v1410 = vld [vmem:[%s11] sm:$0xff]
        %v1411 = vperm.slane %v868, 0
        %v1412 = vmul.f32 %v1410, %v1411
        %1414 = vset.pattern.permute.xlu0 0
        %1415 = vperm.xlu0 %1414, %v1412
        %v1416 = vpop.permute.xlu0 %1415
        %v1418 = vmul.f32 %v1388, %v1416
        %v1419 = vmul.f32 %v1408, %v1416
        %v1420 = vld [vmem:[%s12] sm:$0xff]
        %v1421 = vmul.f32 %v1420, %v1411
        %1423 = vset.pattern.permute.xlu0 0
        %1424 = vperm.xlu0 %1423, %v1421
        %v1425 = vpop.permute.xlu0 %1424
        %v1427 = vadd.f32 %v1418, %v1425
        %v1428 = vadd.f32 %v1419, %v1425
        %v1429 = vmax.f32 %v1427, 0.0
        %v1430 = vmax.f32 %v1428, 0.0
        %v1431 = vadd.f32 %v1429, 0.0
        %v1432 = vadd.f32 %v1430, 0.0
        %s1433 = scalar_lea.vmem %s10, 8
        %v1434 = vld [vmem:[%s1433] sm:$0xff]
        %v1436 = vsel %vm967, %v1434, 0
        %1438 = vmatpush.msra.mxu0 0.0
        %1439 = vmatpush.msra.mxu0 0.0
        %1440 = vmatpush.msra.mxu0 0.0
        %1441 = vmatpush.msra.mxu0 0.0
        %1442 = vmatpush.msra.mxu0 0.0
        %1443 = vmatpush.msra.mxu0 0.0
        %1444 = vmatpush.msra.mxu0 0.0
        %1445 = vmatpush.msra.mxu0 %v1360
        %1446 = vmatpush.msra.mxu0 %v1328
        %1447 = vmatpush.msra.mxu0 %v1296
        %1448 = vmatpush.msra.mxu0 %v1264
        %1449 = vmatpush.msra.mxu0 %v1104
        %1450 = vmatpush.msra.mxu0 %v1232
        %1451 = vmatpush.msra.mxu0 %v1200
        %1452 = vmatpush.msra.mxu0 %v1168
        %1453 = vmatpush.msra.mxu0 %v1136
        %1454 = vmatmul.f32.gmra.mxu0 %v1436
        %v1455 = vpop.f32.mrf.mxu0
        %v1456 = vadd.f32 0.0, %v1455
        %1457 = vdwg.mxu0
        %1458 = vmatpush.msra.mxu0 0.0
        %1459 = vmatpush.msra.mxu0 0.0
        %1460 = vmatpush.msra.mxu0 0.0
        %1461 = vmatpush.msra.mxu0 0.0
        %1462 = vmatpush.msra.mxu0 0.0
        %1463 = vmatpush.msra.mxu0 0.0
        %1464 = vmatpush.msra.mxu0 0.0
        %1465 = vmatpush.msra.mxu0 %v1361
        %1466 = vmatpush.msra.mxu0 %v1329
        %1467 = vmatpush.msra.mxu0 %v1297
        %1468 = vmatpush.msra.mxu0 %v1265
        %1469 = vmatpush.msra.mxu0 %v1105
        %1470 = vmatpush.msra.mxu0 %v1233
        %1471 = vmatpush.msra.mxu0 %v1201
        %1472 = vmatpush.msra.mxu0 %v1169
        %1473 = vmatpush.msra.mxu0 %v1137
        %1474 = vmatmul.f32.gmra.mxu0 %v1436
        %v1475 = vpop.f32.mrf.mxu0
        %v1476 = vadd.f32 0.0, %v1475
        %1477 = vdwg.mxu0
        %s1478 = scalar_lea.vmem %s11, 8
        %v1479 = vld [vmem:[%s1478] sm:$0xff]
        %v1480 = vperm.slane %v868, 1
        %v1481 = vmul.f32 %v1479, %v1480
        %1483 = vset.pattern.permute.xlu0 0
        %1484 = vperm.xlu0 %1483, %v1481
        %v1485 = vpop.permute.xlu0 %1484
        %v1487 = vmul.f32 %v1456, %v1485
        %v1488 = vmul.f32 %v1476, %v1485
        %s1489 = scalar_lea.vmem %s12, 8
        %v1490 = vld [vmem:[%s1489] sm:$0xff]
        %v1491 = vmul.f32 %v1490, %v1480
        %1493 = vset.pattern.permute.xlu0 0
        %1494 = vperm.xlu0 %1493, %v1491
        %v1495 = vpop.permute.xlu0 %1494
        %v1497 = vadd.f32 %v1487, %v1495
        %v1498 = vadd.f32 %v1488, %v1495
        %v1499 = vmax.f32 %v1497, 0.0
        %v1500 = vmax.f32 %v1498, 0.0
        %v1501 = vadd.f32 %v1431, %v1499
        %v1502 = vadd.f32 %v1432, %v1500
        %s1503 = scalar_lea.vmem %s10, 16
        %v1504 = vld [vmem:[%s1503] sm:$0xff]
        %v1506 = vsel %vm967, %v1504, 0
        %1508 = vmatpush.msra.mxu0 0.0
        %1509 = vmatpush.msra.mxu0 0.0
        %1510 = vmatpush.msra.mxu0 0.0
        %1511 = vmatpush.msra.mxu0 0.0
        %1512 = vmatpush.msra.mxu0 0.0
        %1513 = vmatpush.msra.mxu0 0.0
        %1514 = vmatpush.msra.mxu0 0.0
        %1515 = vmatpush.msra.mxu0 %v1362
        %1516 = vmatpush.msra.mxu0 %v1330
        %1517 = vmatpush.msra.mxu0 %v1298
        %1518 = vmatpush.msra.mxu0 %v1266
        %1519 = vmatpush.msra.mxu0 %v1106
        %1520 = vmatpush.msra.mxu0 %v1234
        %1521 = vmatpush.msra.mxu0 %v1202
        %1522 = vmatpush.msra.mxu0 %v1170
        %1523 = vmatpush.msra.mxu0 %v1138
        %1524 = vmatmul.f32.gmra.mxu0 %v1506
        %v1525 = vpop.f32.mrf.mxu0
        %v1526 = vadd.f32 0.0, %v1525
        %1527 = vdwg.mxu0
        %1528 = vmatpush.msra.mxu0 0.0
        %1529 = vmatpush.msra.mxu0 0.0
        %1530 = vmatpush.msra.mxu0 0.0
        %1531 = vmatpush.msra.mxu0 0.0
        %1532 = vmatpush.msra.mxu0 0.0
        %1533 = vmatpush.msra.mxu0 0.0
        %1534 = vmatpush.msra.mxu0 0.0
        %1535 = vmatpush.msra.mxu0 %v1363
        %1536 = vmatpush.msra.mxu0 %v1331
        %1537 = vmatpush.msra.mxu0 %v1299
        %1538 = vmatpush.msra.mxu0 %v1267
        %1539 = vmatpush.msra.mxu0 %v1107
        %1540 = vmatpush.msra.mxu0 %v1235
        %1541 = vmatpush.msra.mxu0 %v1203
        %1542 = vmatpush.msra.mxu0 %v1171
        %1543 = vmatpush.msra.mxu0 %v1139
        %1544 = vmatmul.f32.gmra.mxu0 %v1506
        %v1545 = vpop.f32.mrf.mxu0
        %v1546 = vadd.f32 0.0, %v1545
        %1547 = vdwg.mxu0
        %s1548 = scalar_lea.vmem %s11, 16
        %v1549 = vld [vmem:[%s1548] sm:$0xff]
        %v1550 = vperm.slane %v868, 2
        %v1551 = vmul.f32 %v1549, %v1550
        %1553 = vset.pattern.permute.xlu0 0
        %1554 = vperm.xlu0 %1553, %v1551
        %v1555 = vpop.permute.xlu0 %1554
        %v1557 = vmul.f32 %v1526, %v1555
        %v1558 = vmul.f32 %v1546, %v1555
        %s1559 = scalar_lea.vmem %s12, 16
        %v1560 = vld [vmem:[%s1559] sm:$0xff]
        %v1561 = vmul.f32 %v1560, %v1550
        %1563 = vset.pattern.permute.xlu0 0
        %1564 = vperm.xlu0 %1563, %v1561
        %v1565 = vpop.permute.xlu0 %1564
        %v1567 = vadd.f32 %v1557, %v1565
        %v1568 = vadd.f32 %v1558, %v1565
        %v1569 = vmax.f32 %v1567, 0.0
        %v1570 = vmax.f32 %v1568, 0.0
        %v1571 = vadd.f32 %v1501, %v1569
        %v1572 = vadd.f32 %v1502, %v1570
        %s1573 = scalar_lea.vmem %s10, 24
        %v1574 = vld [vmem:[%s1573] sm:$0xff]
        %v1576 = vsel %vm967, %v1574, 0
        %1578 = vmatpush.msra.mxu0 0.0
        %1579 = vmatpush.msra.mxu0 0.0
        %1580 = vmatpush.msra.mxu0 0.0
        %1581 = vmatpush.msra.mxu0 0.0
        %1582 = vmatpush.msra.mxu0 0.0
        %1583 = vmatpush.msra.mxu0 0.0
        %1584 = vmatpush.msra.mxu0 0.0
        %1585 = vmatpush.msra.mxu0 %v1364
        %1586 = vmatpush.msra.mxu0 %v1332
        %1587 = vmatpush.msra.mxu0 %v1300
        %1588 = vmatpush.msra.mxu0 %v1268
        %1589 = vmatpush.msra.mxu0 %v1108
        %1590 = vmatpush.msra.mxu0 %v1236
        %1591 = vmatpush.msra.mxu0 %v1204
        %1592 = vmatpush.msra.mxu0 %v1172
        %1593 = vmatpush.msra.mxu0 %v1140
        %1594 = vmatmul.f32.gmra.mxu0 %v1576
        %v1595 = vpop.f32.mrf.mxu0
        %v1596 = vadd.f32 0.0, %v1595
        %1597 = vdwg.mxu0
        %1598 = vmatpush.msra.mxu0 0.0
        %1599 = vmatpush.msra.mxu0 0.0
        %1600 = vmatpush.msra.mxu0 0.0
        %1601 = vmatpush.msra.mxu0 0.0
        %1602 = vmatpush.msra.mxu0 0.0
        %1603 = vmatpush.msra.mxu0 0.0
        %1604 = vmatpush.msra.mxu0 0.0
        %1605 = vmatpush.msra.mxu0 %v1365
        %1606 = vmatpush.msra.mxu0 %v1333
        %1607 = vmatpush.msra.mxu0 %v1301
        %1608 = vmatpush.msra.mxu0 %v1269
        %1609 = vmatpush.msra.mxu0 %v1109
        %1610 = vmatpush.msra.mxu0 %v1237
        %1611 = vmatpush.msra.mxu0 %v1205
        %1612 = vmatpush.msra.mxu0 %v1173
        %1613 = vmatpush.msra.mxu0 %v1141
        %1614 = vmatmul.f32.gmra.mxu0 %v1576
        %v1615 = vpop.f32.mrf.mxu0
        %v1616 = vadd.f32 0.0, %v1615
        %1617 = vdwg.mxu0
        %s1618 = scalar_lea.vmem %s11, 24
        %v1619 = vld [vmem:[%s1618] sm:$0xff]
        %v1620 = vperm.slane %v868, 3
        %v1621 = vmul.f32 %v1619, %v1620
        %1623 = vset.pattern.permute.xlu0 0
        %1624 = vperm.xlu0 %1623, %v1621
        %v1625 = vpop.permute.xlu0 %1624
        %v1627 = vmul.f32 %v1596, %v1625
        %v1628 = vmul.f32 %v1616, %v1625
        %s1629 = scalar_lea.vmem %s12, 24
        %v1630 = vld [vmem:[%s1629] sm:$0xff]
        %v1631 = vmul.f32 %v1630, %v1620
        %1633 = vset.pattern.permute.xlu0 0
        %1634 = vperm.xlu0 %1633, %v1631
        %v1635 = vpop.permute.xlu0 %1634
        %v1637 = vadd.f32 %v1627, %v1635
        %v1638 = vadd.f32 %v1628, %v1635
        %v1639 = vmax.f32 %v1637, 0.0
        %v1640 = vmax.f32 %v1638, 0.0
        %v1641 = vadd.f32 %v1571, %v1639
        %v1642 = vadd.f32 %v1572, %v1640
        %1643 = vst [vmem:[%s448] sm:$0xff] %v1641
        %1644 = vst [vmem:[%s448 + $0x8] sm:$0xff] %v1642
        %s1645 = sand.u32 %s318, 1
        %s1646 = scalar_lea.sflag [#allocation3], %s1645
        %s1647 = sand.u32 %s318, 1
        %s1648 = smul.addr %s1647, 16
        %s1649 = scalar_lea.vmem [#allocation2], %s1648
        // Predicated region
        $region73: #{tpu_custom_call.1} parent=71 // pred_check
          %p1650 = pneg %p328
        $region74: #{tpu_custom_call.1} parent=71 // pred_check_branch
          %1652 = sbr.rel (%p1650) target = $region76
        $region75: #{tpu_custom_call.1} parent=71 // pred_region
          %1654 = vsyncadd %s1646, 0
          %s1655 = smul.addr %s27, 2
          %s1656 = smul.addr %s1655, 8
          %s1657 = scalar_lea.hbm %s13, %s1656
          %s1659 = sshll.u32 %s1649, 4
          %s1660 = int_to_ptr.vmem [resolvable:$true] %s1659
          %s1661 = sshll.u32 %s1657, 4
          %s1662 = int_to_ptr.hbm [resolvable:$true] %s1661
          %1664 = dma.vmem_to_hbm [thread:$0]  %s1660, 256, %s1662, %s1646
        $region76: #{tpu_custom_call.1} parent=71 // pred_fallthru
          _
      $region72: #{tpu_custom_call.1} parent=5 // pred_fallthru
        _
      %p1665 = scmp.le.s32.totalorder 2, %s22
      // Predicated region
      $region77: #{tpu_custom_call.1} parent=5 // pred_check
        %p1666 = pneg %p1665
      $region78: #{tpu_custom_call.1} parent=5 // pred_check_branch
        %1668 = sbr.rel (%p1666) target = $region80
      $region79: #{tpu_custom_call.1} parent=5 // pred_region
        %s1669 = ssub.s32 %s22, 2
        // Predicated region
        $region81: #{tpu_custom_call.1} parent=79 // pred_check
          %p1670 = pneg %p334
        $region82: #{tpu_custom_call.1} parent=79 // pred_check_branch
          %1672 = sbr.rel (%p1670) target = $region84
        $region83: #{tpu_custom_call.1} parent=79 // pred_region
          %s1673 = sand.u32 %s319, 1
          %s1674 = scalar_lea.sflag [#allocation3], %s1673
          %s1675 = sand.u32 %s319, 1
          %s1676 = smul.addr %s1675, 16
          %s1677 = scalar_lea.vmem [#allocation2], %s1676
          %1679 = dma.done %s1674, 256
        $region84: #{tpu_custom_call.1} parent=79 // pred_fallthru
          _
      $region80: #{tpu_custom_call.1} parent=5 // pred_fallthru
        _
    $region6: #{tpu_custom_call.1} parent=1 // loop_footer
      %s26 = sadd.s32 1, %s22
    $region7: #{tpu_custom_call.1} parent=1 // loop_footer_branch
      %21 = sbr.rel target = $region3
    $region8: #{tpu_custom_call.1} parent=1 // loop_exit
      _
    %1680 = vsyncpa [#allocation3], 1
    %s1681 = scalar_lea.sflag [#allocation3], 1
    %1682 = vsyncpa %s1681, 1

</llo_original>
